<compile_context>
chip_gen: v6e
topology: v6e:2x2x1
jax: 0.10.0
libtpu: 0.0.40
codegen_flags: <defaults>
</compile_context>

<pallas_src>
import jax
import jax.numpy as jnp
from jax.experimental import pallas as pl
from jax.experimental.pallas import tpu as pltpu


def _encoder_gru_kernel(ids_ref, emb_ref, wih_ref, whh_ref, bias_ref,
                        out_ref, hN_ref):
    """Embedding gather + single-layer GRU over the whole sequence, in VMEM.

    ids_ref  : (S*Bp, 1) int32   token ids, already .view-reordered + padded
    emb_ref  : (V, E)            embedding table
    wih_ref  : (E, 3H)           W_ih^T, gate order [r|z|n] along lanes
    whh_ref  : (H, 3H)           W_hh^T, gate order [r|z|n] along lanes
    bias_ref : (1, 4H)           [b_ir+b_hr | b_iz+b_hz | b_in | b_hn]
    out_ref  : (S, Bp, H)        per-timestep hidden states (GRU `output`)
    hN_ref   : (Bp, H)           final hidden state
    """
    S, Bp, H = out_ref.shape
    V, E = emb_ref.shape
    SB = S * Bp

    # ---- embedding gather fused in-kernel as a one-hot MXU matmul ----
    ids = ids_ref[...]                                          # (S*Bp, 1)
    lanes = jax.lax.broadcasted_iota(jnp.int32, (SB, V), 1)     # (S*Bp, V)
    onehot = (ids == lanes).astype(jnp.float32)
    x2 = jnp.dot(onehot, emb_ref[...],
                 preferred_element_type=jnp.float32)            # (S*Bp, E)

    # ---- hoisted input->hidden projection: ONE fused 3H-wide matmul ----
    gi = jnp.dot(x2, wih_ref[...],
                 preferred_element_type=jnp.float32) + bias_ref[:, :3 * H]

    w_hh3 = whh_ref[...]                                        # (H, 3H)
    b_hn = jnp.broadcast_to(bias_ref[:, 3 * H:], (Bp, H))       # hoisted

    h = jnp.zeros((Bp, H), jnp.float32)
    # S is a small static trip count: statically unrolled, every slice index
    # static, h stays in vregs across the recurrence.
    for t in range(S):
        gi_t = gi[t * Bp:(t + 1) * Bp]                          # (Bp, 3H)
        gh = jnp.dot(h, w_hh3,
                     preferred_element_type=jnp.float32)        # (Bp, 3H)
        # one sigmoid over the concatenated [r|z] 2H-lane slice
        rz = jax.nn.sigmoid(gi_t[:, :2 * H] + gh[:, :2 * H])
        r = rz[:, :H]
        z = rz[:, H:]
        n = jnp.tanh(gi_t[:, 2 * H:] + r * (gh[:, 2 * H:] + b_hn))
        h = (1.0 - z) * n + z * h
        out_ref[t] = h
    hN_ref[...] = h


def prepare_encoder_gru_params(params):
    """One-time repack of PyTorch-layout GRU params (hoisted out of forward)."""
    H = params["w_hh"].shape[1]
    w_ih3 = params["w_ih"].T                      # (E, 3H), columns [r|z|n]
    w_hh3 = params["w_hh"].T                      # (H, 3H)
    b_ih, b_hh = params["b_ih"], params["b_hh"]
    bias4 = jnp.concatenate([
        b_ih[:H] + b_hh[:H],                      # r: both biases folded
        b_ih[H:2 * H] + b_hh[H:2 * H],            # z: both biases folded
        b_ih[2 * H:],                             # b_in
        b_hh[2 * H:],                             # b_hn (stays inside r*(.))
    ])[None, :]                                   # (1, 4H)
    return {
        "embedding": jnp.asarray(params["embedding"], jnp.float32),
        "w_ih3": jnp.asarray(w_ih3, jnp.float32),
        "w_hh3": jnp.asarray(w_hh3, jnp.float32),
        "bias4": jnp.asarray(bias4, jnp.float32),
    }


@jax.jit
def encoder_gru_forward(prepped, input_dialogue):
    """Replicates EncoderGRU.forward: embedding -> .view(S, B, -1) -> GRU."""
    B, S = input_dialogue.shape
    V, E = prepped["embedding"].shape
    H = prepped["w_hh3"].shape[0]

    # torch `x.view(S, B, -1)` is a raw row-major reshape (NOT a transpose):
    # row (t, j) of the viewed tensor is flat row t*B + j of the (B, S)
    # embedded input, which is exactly input_dialogue.reshape(S, B)[t, j].
    ids = input_dialogue.reshape(S, B)
    # Pad batch to the f32 sublane tile (8) AFTER the .view reshape; padded
    # rows gather token 0, evolve independently and are sliced off below.
    Bp = ((B + 7) // 8) * 8
    if Bp != B:
        ids = jnp.pad(ids, ((0, 0), (0, Bp - B)))
    ids = ids.reshape(S * Bp, 1).astype(jnp.int32)

    out_p, hN_p = pl.pallas_call(
        _encoder_gru_kernel,
        out_shape=(jax.ShapeDtypeStruct((S, Bp, H), jnp.float32),
                   jax.ShapeDtypeStruct((Bp, H), jnp.float32)),
        in_specs=[pl.BlockSpec(memory_space=pltpu.MemorySpace.VMEM)] * 5,
        out_specs=(pl.BlockSpec(memory_space=pltpu.MemorySpace.VMEM),
                   pl.BlockSpec(memory_space=pltpu.MemorySpace.VMEM)),
    )(ids, prepped["embedding"], prepped["w_ih3"], prepped["w_hh3"],
      prepped["bias4"])

    output = out_p[:, :B, :]          # (S, B, H)  -- GRU `output`
    hidden = hN_p[:B, :][None]        # (1, B, H)  -- GRU `hidden` (num_layers=1)
    return output, hidden


def _gru_reference(x, w_ih, w_hh, b_ih, b_hh):
    """Pure-JAX PyTorch-exact GRU reference (PyTorch weight layout)."""
    S, B, E = x.shape
    H = w_hh.shape[1]
    W_ir, W_iz, W_in = jnp.split(w_ih, 3, axis=0)
    W_hr, W_hz, W_hn = jnp.split(w_hh, 3, axis=0)
    b_ir, b_iz, b_in = jnp.split(b_ih, 3)
    b_hr, b_hz, b_hn = jnp.split(b_hh, 3)
    h = jnp.zeros((B, H), jnp.float32)
    outs = []
    for t in range(S):
        xt = x[t]
        r = jax.nn.sigmoid(xt @ W_ir.T + b_ir + h @ W_hr.T + b_hr)
        z = jax.nn.sigmoid(xt @ W_iz.T + b_iz + h @ W_hz.T + b_hz)
        n = jnp.tanh(xt @ W_in.T + b_in + r * (h @ W_hn.T + b_hn))
        h = (1.0 - z) * n + z * h
        outs.append(h)
    return jnp.stack(outs, axis=0), h[None]


if __name__ == "__main__":
    vocab_size, embedding_size, hidden_size = 32, 16, 32
    batch_size, seq_len = 2, 8

    key = jax.random.PRNGKey(0)
    k_emb, k_wih, k_whh, k_bih, k_bhh, k_in = jax.random.split(key, 6)
    bound = 1.0 / (hidden_size ** 0.5)

    def u(k, shape):
        return jax.random.uniform(k, shape, jnp.float32, -bound, bound)

    params = {
        "embedding": jax.random.normal(k_emb, (vocab_size, embedding_size),
                                       jnp.float32),
        "w_ih": u(k_wih, (3 * hidden_size, embedding_size)),   # weight_ih_l0
        "w_hh": u(k_whh, (3 * hidden_size, hidden_size)),      # weight_hh_l0
        "b_ih": u(k_bih, (3 * hidden_size,)),                  # bias_ih_l0
        "b_hh": u(k_bhh, (3 * hidden_size,)),                  # bias_hh_l0
    }
    input_dialogue = jax.random.randint(
        k_in, (batch_size, seq_len), 0, vocab_size, dtype=jnp.int32)

    # One-time parameter repack (hoisted out of the per-call forward).
    prepped = prepare_encoder_gru_params(params)

    output, hidden = encoder_gru_forward(prepped, input_dialogue)
    jax.block_until_ready((output, hidden))

    assert output.shape == (seq_len, batch_size, hidden_size)
    assert hidden.shape == (1, batch_size, hidden_size)

    # Correctness check against a pure-JAX reference (same .view semantics).
    x_chk = jnp.take(params["embedding"], input_dialogue, axis=0)
    x_chk = x_chk.reshape(seq_len, batch_size, embedding_size)
    out_expect, hid_expect = _gru_reference(
        x_chk, params["w_ih"], params["w_hh"], params["b_ih"], params["b_hh"])
    assert jnp.allclose(output, out_expect, atol=1e-3, rtol=1e-3)
    assert jnp.allclose(hidden, hid_expect, atol=1e-3, rtol=1e-3)

    print("KERNEL_OK")
</pallas_src>

<mosaic_0001>
module attributes {stable_mosaic.version = 11 : i64} {
  func.func @_encoder_gru_kernel(%arg0: memref<64x1xi32, #tpu.memory_space<vmem>>, %arg1: memref<32x16xf32, #tpu.memory_space<vmem>>, %arg2: memref<16x96xf32, #tpu.memory_space<vmem>>, %arg3: memref<32x96xf32, #tpu.memory_space<vmem>>, %arg4: memref<1x128xf32, #tpu.memory_space<vmem>>, %arg5: memref<8x8x32xf32, #tpu.memory_space<vmem>>, %arg6: memref<8x32xf32, #tpu.memory_space<vmem>>) attributes {dimension_semantics = [], scalar_prefetch = 0 : i64, scratch_operands = 0 : i64, tpu.core_type = #tpu.core_type<tc>} {
    %c0 = arith.constant 0 : index
    %c0_0 = arith.constant 0 : index
    %0 = vector.load %arg0[%c0, %c0_0] : memref<64x1xi32, #tpu.memory_space<vmem>>, vector<64x1xi32>
    %1 = tpu.iota {dimensions = array<i32: 1>} : vector<64x32xi32>
    %2 = vector.broadcast %0 : vector<64x1xi32> to vector<64x32xi32>
    %3 = arith.cmpi eq, %2, %1 : vector<64x32xi32>
    %4 = arith.extui %3 : vector<64x32xi1> to vector<64x32xi32>
    %5 = arith.sitofp %4 : vector<64x32xi32> to vector<64x32xf32>
    %c0_1 = arith.constant 0 : index
    %c0_2 = arith.constant 0 : index
    %6 = vector.load %arg1[%c0_1, %c0_2] : memref<32x16xf32, #tpu.memory_space<vmem>>, vector<32x16xf32>
    %cst = arith.constant dense<0.000000e+00> : vector<64x16xf32>
    %7 = tpu.matmul %5, %6, %cst {dimension_numbers = #tpu.dot_dimension_numbers<[1], [0], [0], [1], [0, 0, 1, 1], [], []>} : vector<64x32xf32>, vector<32x16xf32>, vector<64x16xf32> -> vector<64x16xf32>
    %c0_3 = arith.constant 0 : index
    %c0_4 = arith.constant 0 : index
    %8 = vector.load %arg2[%c0_3, %c0_4] : memref<16x96xf32, #tpu.memory_space<vmem>>, vector<16x96xf32>
    %cst_5 = arith.constant dense<0.000000e+00> : vector<64x96xf32>
    %9 = tpu.matmul %7, %8, %cst_5 {dimension_numbers = #tpu.dot_dimension_numbers<[1], [0], [0], [1], [0, 0, 1, 1], [], []>} : vector<64x16xf32>, vector<16x96xf32>, vector<64x96xf32> -> vector<64x96xf32>
    %c0_6 = arith.constant 0 : index
    %c0_7 = arith.constant 0 : index
    %10 = vector.load %arg4[%c0_6, %c0_7] : memref<1x128xf32, #tpu.memory_space<vmem>>, vector<1x96xf32>
    %11 = vector.broadcast %10 : vector<1x96xf32> to vector<64x96xf32>
    %12 = arith.addf %9, %11 : vector<64x96xf32>
    %c0_8 = arith.constant 0 : index
    %c0_9 = arith.constant 0 : index
    %13 = vector.load %arg3[%c0_8, %c0_9] : memref<32x96xf32, #tpu.memory_space<vmem>>, vector<32x96xf32>
    %c0_10 = arith.constant 0 : index
    %c96 = arith.constant 96 : index
    %14 = vector.load %arg4[%c0_10, %c96] : memref<1x128xf32, #tpu.memory_space<vmem>>, vector<1x32xf32>
    %15 = vector.shape_cast %14 : vector<1x32xf32> to vector<1x32xf32>
    %16 = vector.broadcast %15 : vector<1x32xf32> to vector<8x32xf32>
    %cst_11 = arith.constant 0.000000e+00 : f32
    %17 = vector.broadcast %cst_11 : f32 to vector<8x32xf32>
    %18 = vector.extract_strided_slice %12 {offsets = [0, 0], sizes = [8, 96], strides = [1, 1]} : vector<64x96xf32> to vector<8x96xf32>
    %cst_12 = arith.constant dense<0.000000e+00> : vector<8x96xf32>
    %19 = tpu.matmul %17, %13, %cst_12 {dimension_numbers = #tpu.dot_dimension_numbers<[1], [0], [0], [1], [0, 0, 1, 1], [], []>} : vector<8x32xf32>, vector<32x96xf32>, vector<8x96xf32> -> vector<8x96xf32>
    %20 = vector.extract_strided_slice %18 {offsets = [0, 0], sizes = [8, 64], strides = [1, 1]} : vector<8x96xf32> to vector<8x64xf32>
    %21 = vector.extract_strided_slice %19 {offsets = [0, 0], sizes = [8, 64], strides = [1, 1]} : vector<8x96xf32> to vector<8x64xf32>
    %22 = arith.addf %20, %21 : vector<8x64xf32>
    %23 = arith.negf %22 : vector<8x64xf32>
    %24 = math.exp %23 : vector<8x64xf32>
    %cst_13 = arith.constant 1.000000e+00 : f32
    %25 = vector.broadcast %cst_13 : f32 to vector<8x64xf32>
    %26 = arith.addf %25, %24 : vector<8x64xf32>
    %27 = arith.divf %25, %26 : vector<8x64xf32>
    %28 = vector.extract_strided_slice %27 {offsets = [0, 0], sizes = [8, 32], strides = [1, 1]} : vector<8x64xf32> to vector<8x32xf32>
    %29 = vector.extract_strided_slice %27 {offsets = [0, 32], sizes = [8, 32], strides = [1, 1]} : vector<8x64xf32> to vector<8x32xf32>
    %30 = vector.extract_strided_slice %18 {offsets = [0, 64], sizes = [8, 32], strides = [1, 1]} : vector<8x96xf32> to vector<8x32xf32>
    %31 = vector.extract_strided_slice %19 {offsets = [0, 64], sizes = [8, 32], strides = [1, 1]} : vector<8x96xf32> to vector<8x32xf32>
    %32 = arith.addf %31, %16 : vector<8x32xf32>
    %33 = arith.mulf %28, %32 : vector<8x32xf32>
    %34 = arith.addf %30, %33 : vector<8x32xf32>
    %35 = math.tanh %34 : vector<8x32xf32>
    %cst_14 = arith.constant 1.000000e+00 : f32
    %36 = vector.broadcast %cst_14 : f32 to vector<8x32xf32>
    %37 = arith.subf %36, %29 : vector<8x32xf32>
    %38 = arith.mulf %37, %35 : vector<8x32xf32>
    %39 = arith.mulf %29, %17 : vector<8x32xf32>
    %40 = arith.addf %38, %39 : vector<8x32xf32>
    %c0_15 = arith.constant 0 : index
    %c0_16 = arith.constant 0 : index
    %c0_17 = arith.constant 0 : index
    %41 = vector.load %arg5[%c0_15, %c0_16, %c0_17] : memref<8x8x32xf32, #tpu.memory_space<vmem>>, vector<1x8x32xf32>
    %42 = vector.shape_cast %41 : vector<1x8x32xf32> to vector<8x32xf32>
    %43 = vector.shape_cast %40 : vector<8x32xf32> to vector<1x8x32xf32>
    tpu.vector_store %arg5[%c0_15, %c0_16, %c0_17], %43 {strides = array<i32>} : memref<8x8x32xf32, #tpu.memory_space<vmem>>, vector<1x8x32xf32>,
    %44 = vector.extract_strided_slice %12 {offsets = [8, 0], sizes = [8, 96], strides = [1, 1]} : vector<64x96xf32> to vector<8x96xf32>
    %cst_18 = arith.constant dense<0.000000e+00> : vector<8x96xf32>
    %45 = tpu.matmul %40, %13, %cst_18 {dimension_numbers = #tpu.dot_dimension_numbers<[1], [0], [0], [1], [0, 0, 1, 1], [], []>} : vector<8x32xf32>, vector<32x96xf32>, vector<8x96xf32> -> vector<8x96xf32>
    %46 = vector.extract_strided_slice %44 {offsets = [0, 0], sizes = [8, 64], strides = [1, 1]} : vector<8x96xf32> to vector<8x64xf32>
    %47 = vector.extract_strided_slice %45 {offsets = [0, 0], sizes = [8, 64], strides = [1, 1]} : vector<8x96xf32> to vector<8x64xf32>
    %48 = arith.addf %46, %47 : vector<8x64xf32>
    %49 = arith.negf %48 : vector<8x64xf32>
    %50 = math.exp %49 : vector<8x64xf32>
    %cst_19 = arith.constant 1.000000e+00 : f32
    %51 = vector.broadcast %cst_19 : f32 to vector<8x64xf32>
    %52 = arith.addf %51, %50 : vector<8x64xf32>
    %53 = arith.divf %51, %52 : vector<8x64xf32>
    %54 = vector.extract_strided_slice %53 {offsets = [0, 0], sizes = [8, 32], strides = [1, 1]} : vector<8x64xf32> to vector<8x32xf32>
    %55 = vector.extract_strided_slice %53 {offsets = [0, 32], sizes = [8, 32], strides = [1, 1]} : vector<8x64xf32> to vector<8x32xf32>
    %56 = vector.extract_strided_slice %44 {offsets = [0, 64], sizes = [8, 32], strides = [1, 1]} : vector<8x96xf32> to vector<8x32xf32>
    %57 = vector.extract_strided_slice %45 {offsets = [0, 64], sizes = [8, 32], strides = [1, 1]} : vector<8x96xf32> to vector<8x32xf32>
    %58 = arith.addf %57, %16 : vector<8x32xf32>
    %59 = arith.mulf %54, %58 : vector<8x32xf32>
    %60 = arith.addf %56, %59 : vector<8x32xf32>
    %61 = math.tanh %60 : vector<8x32xf32>
    %cst_20 = arith.constant 1.000000e+00 : f32
    %62 = vector.broadcast %cst_20 : f32 to vector<8x32xf32>
    %63 = arith.subf %62, %55 : vector<8x32xf32>
    %64 = arith.mulf %63, %61 : vector<8x32xf32>
    %65 = arith.mulf %55, %40 : vector<8x32xf32>
    %66 = arith.addf %64, %65 : vector<8x32xf32>
    %c1 = arith.constant 1 : index
    %c0_21 = arith.constant 0 : index
    %c0_22 = arith.constant 0 : index
    %67 = vector.load %arg5[%c1, %c0_21, %c0_22] : memref<8x8x32xf32, #tpu.memory_space<vmem>>, vector<1x8x32xf32>
    %68 = vector.shape_cast %67 : vector<1x8x32xf32> to vector<8x32xf32>
    %69 = vector.shape_cast %66 : vector<8x32xf32> to vector<1x8x32xf32>
    tpu.vector_store %arg5[%c1, %c0_21, %c0_22], %69 {strides = array<i32>} : memref<8x8x32xf32, #tpu.memory_space<vmem>>, vector<1x8x32xf32>,
    %70 = vector.extract_strided_slice %12 {offsets = [16, 0], sizes = [8, 96], strides = [1, 1]} : vector<64x96xf32> to vector<8x96xf32>
    %cst_23 = arith.constant dense<0.000000e+00> : vector<8x96xf32>
    %71 = tpu.matmul %66, %13, %cst_23 {dimension_numbers = #tpu.dot_dimension_numbers<[1], [0], [0], [1], [0, 0, 1, 1], [], []>} : vector<8x32xf32>, vector<32x96xf32>, vector<8x96xf32> -> vector<8x96xf32>
    %72 = vector.extract_strided_slice %70 {offsets = [0, 0], sizes = [8, 64], strides = [1, 1]} : vector<8x96xf32> to vector<8x64xf32>
    %73 = vector.extract_strided_slice %71 {offsets = [0, 0], sizes = [8, 64], strides = [1, 1]} : vector<8x96xf32> to vector<8x64xf32>
    %74 = arith.addf %72, %73 : vector<8x64xf32>
    %75 = arith.negf %74 : vector<8x64xf32>
    %76 = math.exp %75 : vector<8x64xf32>
    %cst_24 = arith.constant 1.000000e+00 : f32
    %77 = vector.broadcast %cst_24 : f32 to vector<8x64xf32>
    %78 = arith.addf %77, %76 : vector<8x64xf32>
    %79 = arith.divf %77, %78 : vector<8x64xf32>
    %80 = vector.extract_strided_slice %79 {offsets = [0, 0], sizes = [8, 32], strides = [1, 1]} : vector<8x64xf32> to vector<8x32xf32>
    %81 = vector.extract_strided_slice %79 {offsets = [0, 32], sizes = [8, 32], strides = [1, 1]} : vector<8x64xf32> to vector<8x32xf32>
    %82 = vector.extract_strided_slice %70 {offsets = [0, 64], sizes = [8, 32], strides = [1, 1]} : vector<8x96xf32> to vector<8x32xf32>
    %83 = vector.extract_strided_slice %71 {offsets = [0, 64], sizes = [8, 32], strides = [1, 1]} : vector<8x96xf32> to vector<8x32xf32>
    %84 = arith.addf %83, %16 : vector<8x32xf32>
    %85 = arith.mulf %80, %84 : vector<8x32xf32>
    %86 = arith.addf %82, %85 : vector<8x32xf32>
    %87 = math.tanh %86 : vector<8x32xf32>
    %cst_25 = arith.constant 1.000000e+00 : f32
    %88 = vector.broadcast %cst_25 : f32 to vector<8x32xf32>
    %89 = arith.subf %88, %81 : vector<8x32xf32>
    %90 = arith.mulf %89, %87 : vector<8x32xf32>
    %91 = arith.mulf %81, %66 : vector<8x32xf32>
    %92 = arith.addf %90, %91 : vector<8x32xf32>
    %c2 = arith.constant 2 : index
    %c0_26 = arith.constant 0 : index
    %c0_27 = arith.constant 0 : index
    %93 = vector.load %arg5[%c2, %c0_26, %c0_27] : memref<8x8x32xf32, #tpu.memory_space<vmem>>, vector<1x8x32xf32>
    %94 = vector.shape_cast %93 : vector<1x8x32xf32> to vector<8x32xf32>
    %95 = vector.shape_cast %92 : vector<8x32xf32> to vector<1x8x32xf32>
    tpu.vector_store %arg5[%c2, %c0_26, %c0_27], %95 {strides = array<i32>} : memref<8x8x32xf32, #tpu.memory_space<vmem>>, vector<1x8x32xf32>,
    %96 = vector.extract_strided_slice %12 {offsets = [24, 0], sizes = [8, 96], strides = [1, 1]} : vector<64x96xf32> to vector<8x96xf32>
    %cst_28 = arith.constant dense<0.000000e+00> : vector<8x96xf32>
    %97 = tpu.matmul %92, %13, %cst_28 {dimension_numbers = #tpu.dot_dimension_numbers<[1], [0], [0], [1], [0, 0, 1, 1], [], []>} : vector<8x32xf32>, vector<32x96xf32>, vector<8x96xf32> -> vector<8x96xf32>
    %98 = vector.extract_strided_slice %96 {offsets = [0, 0], sizes = [8, 64], strides = [1, 1]} : vector<8x96xf32> to vector<8x64xf32>
    %99 = vector.extract_strided_slice %97 {offsets = [0, 0], sizes = [8, 64], strides = [1, 1]} : vector<8x96xf32> to vector<8x64xf32>
    %100 = arith.addf %98, %99 : vector<8x64xf32>
    %101 = arith.negf %100 : vector<8x64xf32>
    %102 = math.exp %101 : vector<8x64xf32>
    %cst_29 = arith.constant 1.000000e+00 : f32
    %103 = vector.broadcast %cst_29 : f32 to vector<8x64xf32>
    %104 = arith.addf %103, %102 : vector<8x64xf32>
    %105 = arith.divf %103, %104 : vector<8x64xf32>
    %106 = vector.extract_strided_slice %105 {offsets = [0, 0], sizes = [8, 32], strides = [1, 1]} : vector<8x64xf32> to vector<8x32xf32>
    %107 = vector.extract_strided_slice %105 {offsets = [0, 32], sizes = [8, 32], strides = [1, 1]} : vector<8x64xf32> to vector<8x32xf32>
    %108 = vector.extract_strided_slice %96 {offsets = [0, 64], sizes = [8, 32], strides = [1, 1]} : vector<8x96xf32> to vector<8x32xf32>
    %109 = vector.extract_strided_slice %97 {offsets = [0, 64], sizes = [8, 32], strides = [1, 1]} : vector<8x96xf32> to vector<8x32xf32>
    %110 = arith.addf %109, %16 : vector<8x32xf32>
    %111 = arith.mulf %106, %110 : vector<8x32xf32>
    %112 = arith.addf %108, %111 : vector<8x32xf32>
    %113 = math.tanh %112 : vector<8x32xf32>
    %cst_30 = arith.constant 1.000000e+00 : f32
    %114 = vector.broadcast %cst_30 : f32 to vector<8x32xf32>
    %115 = arith.subf %114, %107 : vector<8x32xf32>
    %116 = arith.mulf %115, %113 : vector<8x32xf32>
    %117 = arith.mulf %107, %92 : vector<8x32xf32>
    %118 = arith.addf %116, %117 : vector<8x32xf32>
    %c3 = arith.constant 3 : index
    %c0_31 = arith.constant 0 : index
    %c0_32 = arith.constant 0 : index
    %119 = vector.load %arg5[%c3, %c0_31, %c0_32] : memref<8x8x32xf32, #tpu.memory_space<vmem>>, vector<1x8x32xf32>
    %120 = vector.shape_cast %119 : vector<1x8x32xf32> to vector<8x32xf32>
    %121 = vector.shape_cast %118 : vector<8x32xf32> to vector<1x8x32xf32>
    tpu.vector_store %arg5[%c3, %c0_31, %c0_32], %121 {strides = array<i32>} : memref<8x8x32xf32, #tpu.memory_space<vmem>>, vector<1x8x32xf32>,
    %122 = vector.extract_strided_slice %12 {offsets = [32, 0], sizes = [8, 96], strides = [1, 1]} : vector<64x96xf32> to vector<8x96xf32>
    %cst_33 = arith.constant dense<0.000000e+00> : vector<8x96xf32>
    %123 = tpu.matmul %118, %13, %cst_33 {dimension_numbers = #tpu.dot_dimension_numbers<[1], [0], [0], [1], [0, 0, 1, 1], [], []>} : vector<8x32xf32>, vector<32x96xf32>, vector<8x96xf32> -> vector<8x96xf32>
    %124 = vector.extract_strided_slice %122 {offsets = [0, 0], sizes = [8, 64], strides = [1, 1]} : vector<8x96xf32> to vector<8x64xf32>
    %125 = vector.extract_strided_slice %123 {offsets = [0, 0], sizes = [8, 64], strides = [1, 1]} : vector<8x96xf32> to vector<8x64xf32>
    %126 = arith.addf %124, %125 : vector<8x64xf32>
    %127 = arith.negf %126 : vector<8x64xf32>
    %128 = math.exp %127 : vector<8x64xf32>
    %cst_34 = arith.constant 1.000000e+00 : f32
    %129 = vector.broadcast %cst_34 : f32 to vector<8x64xf32>
    %130 = arith.addf %129, %128 : vector<8x64xf32>
    %131 = arith.divf %129, %130 : vector<8x64xf32>
    %132 = vector.extract_strided_slice %131 {offsets = [0, 0], sizes = [8, 32], strides = [1, 1]} : vector<8x64xf32> to vector<8x32xf32>
    %133 = vector.extract_strided_slice %131 {offsets = [0, 32], sizes = [8, 32], strides = [1, 1]} : vector<8x64xf32> to vector<8x32xf32>
    %134 = vector.extract_strided_slice %122 {offsets = [0, 64], sizes = [8, 32], strides = [1, 1]} : vector<8x96xf32> to vector<8x32xf32>
    %135 = vector.extract_strided_slice %123 {offsets = [0, 64], sizes = [8, 32], strides = [1, 1]} : vector<8x96xf32> to vector<8x32xf32>
    %136 = arith.addf %135, %16 : vector<8x32xf32>
    %137 = arith.mulf %132, %136 : vector<8x32xf32>
    %138 = arith.addf %134, %137 : vector<8x32xf32>
    %139 = math.tanh %138 : vector<8x32xf32>
    %cst_35 = arith.constant 1.000000e+00 : f32
    %140 = vector.broadcast %cst_35 : f32 to vector<8x32xf32>
    %141 = arith.subf %140, %133 : vector<8x32xf32>
    %142 = arith.mulf %141, %139 : vector<8x32xf32>
    %143 = arith.mulf %133, %118 : vector<8x32xf32>
    %144 = arith.addf %142, %143 : vector<8x32xf32>
    %c4 = arith.constant 4 : index
    %c0_36 = arith.constant 0 : index
    %c0_37 = arith.constant 0 : index
    %145 = vector.load %arg5[%c4, %c0_36, %c0_37] : memref<8x8x32xf32, #tpu.memory_space<vmem>>, vector<1x8x32xf32>
    %146 = vector.shape_cast %145 : vector<1x8x32xf32> to vector<8x32xf32>
    %147 = vector.shape_cast %144 : vector<8x32xf32> to vector<1x8x32xf32>
    tpu.vector_store %arg5[%c4, %c0_36, %c0_37], %147 {strides = array<i32>} : memref<8x8x32xf32, #tpu.memory_space<vmem>>, vector<1x8x32xf32>,
    %148 = vector.extract_strided_slice %12 {offsets = [40, 0], sizes = [8, 96], strides = [1, 1]} : vector<64x96xf32> to vector<8x96xf32>
    %cst_38 = arith.constant dense<0.000000e+00> : vector<8x96xf32>
    %149 = tpu.matmul %144, %13, %cst_38 {dimension_numbers = #tpu.dot_dimension_numbers<[1], [0], [0], [1], [0, 0, 1, 1], [], []>} : vector<8x32xf32>, vector<32x96xf32>, vector<8x96xf32> -> vector<8x96xf32>
    %150 = vector.extract_strided_slice %148 {offsets = [0, 0], sizes = [8, 64], strides = [1, 1]} : vector<8x96xf32> to vector<8x64xf32>
    %151 = vector.extract_strided_slice %149 {offsets = [0, 0], sizes = [8, 64], strides = [1, 1]} : vector<8x96xf32> to vector<8x64xf32>
    %152 = arith.addf %150, %151 : vector<8x64xf32>
    %153 = arith.negf %152 : vector<8x64xf32>
    %154 = math.exp %153 : vector<8x64xf32>
    %cst_39 = arith.constant 1.000000e+00 : f32
    %155 = vector.broadcast %cst_39 : f32 to vector<8x64xf32>
    %156 = arith.addf %155, %154 : vector<8x64xf32>
    %157 = arith.divf %155, %156 : vector<8x64xf32>
    %158 = vector.extract_strided_slice %157 {offsets = [0, 0], sizes = [8, 32], strides = [1, 1]} : vector<8x64xf32> to vector<8x32xf32>
    %159 = vector.extract_strided_slice %157 {offsets = [0, 32], sizes = [8, 32], strides = [1, 1]} : vector<8x64xf32> to vector<8x32xf32>
    %160 = vector.extract_strided_slice %148 {offsets = [0, 64], sizes = [8, 32], strides = [1, 1]} : vector<8x96xf32> to vector<8x32xf32>
    %161 = vector.extract_strided_slice %149 {offsets = [0, 64], sizes = [8, 32], strides = [1, 1]} : vector<8x96xf32> to vector<8x32xf32>
    %162 = arith.addf %161, %16 : vector<8x32xf32>
    %163 = arith.mulf %158, %162 : vector<8x32xf32>
    %164 = arith.addf %160, %163 : vector<8x32xf32>
    %165 = math.tanh %164 : vector<8x32xf32>
    %cst_40 = arith.constant 1.000000e+00 : f32
    %166 = vector.broadcast %cst_40 : f32 to vector<8x32xf32>
    %167 = arith.subf %166, %159 : vector<8x32xf32>
    %168 = arith.mulf %167, %165 : vector<8x32xf32>
    %169 = arith.mulf %159, %144 : vector<8x32xf32>
    %170 = arith.addf %168, %169 : vector<8x32xf32>
    %c5 = arith.constant 5 : index
    %c0_41 = arith.constant 0 : index
    %c0_42 = arith.constant 0 : index
    %171 = vector.load %arg5[%c5, %c0_41, %c0_42] : memref<8x8x32xf32, #tpu.memory_space<vmem>>, vector<1x8x32xf32>
    %172 = vector.shape_cast %171 : vector<1x8x32xf32> to vector<8x32xf32>
    %173 = vector.shape_cast %170 : vector<8x32xf32> to vector<1x8x32xf32>
    tpu.vector_store %arg5[%c5, %c0_41, %c0_42], %173 {strides = array<i32>} : memref<8x8x32xf32, #tpu.memory_space<vmem>>, vector<1x8x32xf32>,
    %174 = vector.extract_strided_slice %12 {offsets = [48, 0], sizes = [8, 96], strides = [1, 1]} : vector<64x96xf32> to vector<8x96xf32>
    %cst_43 = arith.constant dense<0.000000e+00> : vector<8x96xf32>
    %175 = tpu.matmul %170, %13, %cst_43 {dimension_numbers = #tpu.dot_dimension_numbers<[1], [0], [0], [1], [0, 0, 1, 1], [], []>} : vector<8x32xf32>, vector<32x96xf32>, vector<8x96xf32> -> vector<8x96xf32>
    %176 = vector.extract_strided_slice %174 {offsets = [0, 0], sizes = [8, 64], strides = [1, 1]} : vector<8x96xf32> to vector<8x64xf32>
    %177 = vector.extract_strided_slice %175 {offsets = [0, 0], sizes = [8, 64], strides = [1, 1]} : vector<8x96xf32> to vector<8x64xf32>
    %178 = arith.addf %176, %177 : vector<8x64xf32>
    %179 = arith.negf %178 : vector<8x64xf32>
    %180 = math.exp %179 : vector<8x64xf32>
    %cst_44 = arith.constant 1.000000e+00 : f32
    %181 = vector.broadcast %cst_44 : f32 to vector<8x64xf32>
    %182 = arith.addf %181, %180 : vector<8x64xf32>
    %183 = arith.divf %181, %182 : vector<8x64xf32>
    %184 = vector.extract_strided_slice %183 {offsets = [0, 0], sizes = [8, 32], strides = [1, 1]} : vector<8x64xf32> to vector<8x32xf32>
    %185 = vector.extract_strided_slice %183 {offsets = [0, 32], sizes = [8, 32], strides = [1, 1]} : vector<8x64xf32> to vector<8x32xf32>
    %186 = vector.extract_strided_slice %174 {offsets = [0, 64], sizes = [8, 32], strides = [1, 1]} : vector<8x96xf32> to vector<8x32xf32>
    %187 = vector.extract_strided_slice %175 {offsets = [0, 64], sizes = [8, 32], strides = [1, 1]} : vector<8x96xf32> to vector<8x32xf32>
    %188 = arith.addf %187, %16 : vector<8x32xf32>
    %189 = arith.mulf %184, %188 : vector<8x32xf32>
    %190 = arith.addf %186, %189 : vector<8x32xf32>
    %191 = math.tanh %190 : vector<8x32xf32>
    %cst_45 = arith.constant 1.000000e+00 : f32
    %192 = vector.broadcast %cst_45 : f32 to vector<8x32xf32>
    %193 = arith.subf %192, %185 : vector<8x32xf32>
    %194 = arith.mulf %193, %191 : vector<8x32xf32>
    %195 = arith.mulf %185, %170 : vector<8x32xf32>
    %196 = arith.addf %194, %195 : vector<8x32xf32>
    %c6 = arith.constant 6 : index
    %c0_46 = arith.constant 0 : index
    %c0_47 = arith.constant 0 : index
    %197 = vector.load %arg5[%c6, %c0_46, %c0_47] : memref<8x8x32xf32, #tpu.memory_space<vmem>>, vector<1x8x32xf32>
    %198 = vector.shape_cast %197 : vector<1x8x32xf32> to vector<8x32xf32>
    %199 = vector.shape_cast %196 : vector<8x32xf32> to vector<1x8x32xf32>
    tpu.vector_store %arg5[%c6, %c0_46, %c0_47], %199 {strides = array<i32>} : memref<8x8x32xf32, #tpu.memory_space<vmem>>, vector<1x8x32xf32>,
    %200 = vector.extract_strided_slice %12 {offsets = [56, 0], sizes = [8, 96], strides = [1, 1]} : vector<64x96xf32> to vector<8x96xf32>
    %cst_48 = arith.constant dense<0.000000e+00> : vector<8x96xf32>
    %201 = tpu.matmul %196, %13, %cst_48 {dimension_numbers = #tpu.dot_dimension_numbers<[1], [0], [0], [1], [0, 0, 1, 1], [], []>} : vector<8x32xf32>, vector<32x96xf32>, vector<8x96xf32> -> vector<8x96xf32>
    %202 = vector.extract_strided_slice %200 {offsets = [0, 0], sizes = [8, 64], strides = [1, 1]} : vector<8x96xf32> to vector<8x64xf32>
    %203 = vector.extract_strided_slice %201 {offsets = [0, 0], sizes = [8, 64], strides = [1, 1]} : vector<8x96xf32> to vector<8x64xf32>
    %204 = arith.addf %202, %203 : vector<8x64xf32>
    %205 = arith.negf %204 : vector<8x64xf32>
    %206 = math.exp %205 : vector<8x64xf32>
    %cst_49 = arith.constant 1.000000e+00 : f32
    %207 = vector.broadcast %cst_49 : f32 to vector<8x64xf32>
    %208 = arith.addf %207, %206 : vector<8x64xf32>
    %209 = arith.divf %207, %208 : vector<8x64xf32>
    %210 = vector.extract_strided_slice %209 {offsets = [0, 0], sizes = [8, 32], strides = [1, 1]} : vector<8x64xf32> to vector<8x32xf32>
    %211 = vector.extract_strided_slice %209 {offsets = [0, 32], sizes = [8, 32], strides = [1, 1]} : vector<8x64xf32> to vector<8x32xf32>
    %212 = vector.extract_strided_slice %200 {offsets = [0, 64], sizes = [8, 32], strides = [1, 1]} : vector<8x96xf32> to vector<8x32xf32>
    %213 = vector.extract_strided_slice %201 {offsets = [0, 64], sizes = [8, 32], strides = [1, 1]} : vector<8x96xf32> to vector<8x32xf32>
    %214 = arith.addf %213, %16 : vector<8x32xf32>
    %215 = arith.mulf %210, %214 : vector<8x32xf32>
    %216 = arith.addf %212, %215 : vector<8x32xf32>
    %217 = math.tanh %216 : vector<8x32xf32>
    %cst_50 = arith.constant 1.000000e+00 : f32
    %218 = vector.broadcast %cst_50 : f32 to vector<8x32xf32>
    %219 = arith.subf %218, %211 : vector<8x32xf32>
    %220 = arith.mulf %219, %217 : vector<8x32xf32>
    %221 = arith.mulf %211, %196 : vector<8x32xf32>
    %222 = arith.addf %220, %221 : vector<8x32xf32>
    %c7 = arith.constant 7 : index
    %c0_51 = arith.constant 0 : index
    %c0_52 = arith.constant 0 : index
    %223 = vector.load %arg5[%c7, %c0_51, %c0_52] : memref<8x8x32xf32, #tpu.memory_space<vmem>>, vector<1x8x32xf32>
    %224 = vector.shape_cast %223 : vector<1x8x32xf32> to vector<8x32xf32>
    %225 = vector.shape_cast %222 : vector<8x32xf32> to vector<1x8x32xf32>
    tpu.vector_store %arg5[%c7, %c0_51, %c0_52], %225 {strides = array<i32>} : memref<8x8x32xf32, #tpu.memory_space<vmem>>, vector<1x8x32xf32>,
    %c0_53 = arith.constant 0 : index
    %c0_54 = arith.constant 0 : index
    %226 = vector.load %arg6[%c0_53, %c0_54] : memref<8x32xf32, #tpu.memory_space<vmem>>, vector<8x32xf32>
    tpu.vector_store %arg6[%c0_53, %c0_54], %222 {strides = array<i32>} : memref<8x32xf32, #tpu.memory_space<vmem>>, vector<8x32xf32>,
    return
  }
}

</mosaic_0001>

<llo_original>
// kernel: encoder_gru_forward.1
$region0: #{encoder_gru_forward.1}
  #allocation0 [shape = 'u32[]', space=smem, size = 0x4, offset = 0x4, fixed_abs, tag = 'smem constant byte address 0x4 - core index']
  #allocation1 [shape = 'u32[144,128]{1,0:T(1,128)}', space=vmem, size = 0x12000, scoped, tag = 'internal scratch']
  %s0 = inlined_call_operand.vmem [shape: s32[64,1], index: 0, kind: input, shape index: {}]
  %s1 = inlined_call_operand.vmem [shape: f32[32,16], index: 1, kind: input, shape index: {}]
  %s2 = inlined_call_operand.vmem [shape: f32[16,96], index: 2, kind: input, shape index: {}]
  %s3 = inlined_call_operand.vmem [shape: f32[32,96], index: 3, kind: input, shape index: {}]
  %s4 = inlined_call_operand.vmem [shape: f32[1,128], index: 4, kind: input, shape index: {}]
  %s5 = inlined_call_operand.vmem [shape: f32[8,8,32], index: 5, kind: output, shape index: {0}]
  %s6 = inlined_call_operand.vmem [shape: f32[8,32], index: 6, kind: output, shape index: {1}]
  %7 = xla_tuple %s5, %s6
  %s8 = sld [smem:[#allocation0]]
  $region38: #{encoder_gru_forward.1} parent=0
    _
  %s10 = ssub.s32 1, %s8
  %s11 = scalar_select 0, %s10, %s8
  // Predicated region
  $region2: #{encoder_gru_forward.1} parent=0 // pred_check
    _
  $region3: #{encoder_gru_forward.1} parent=0 // pred_check_branch
    %13 = sbr.rel (0) target = $region5
  $region4: #{encoder_gru_forward.1} parent=0 // pred_region
    _
  $region5: #{encoder_gru_forward.1} parent=0 // pred_fallthru
    _
  // Predicated region
  $region6: #{encoder_gru_forward.1} parent=0 // pred_check
    _
  $region7: #{encoder_gru_forward.1} parent=0 // pred_check_branch
    %15 = sbr.rel (0) target = $region9
  $region8: #{encoder_gru_forward.1} parent=0 // pred_region
    _
  $region9: #{encoder_gru_forward.1} parent=0 // pred_fallthru
    _
  // Predicated region
  $region10: #{encoder_gru_forward.1} parent=0 // pred_check
    _
  $region11: #{encoder_gru_forward.1} parent=0 // pred_check_branch
    %17 = sbr.rel (0) target = $region13
  $region12: #{encoder_gru_forward.1} parent=0 // pred_region
    _
  $region13: #{encoder_gru_forward.1} parent=0 // pred_fallthru
    _
  // Predicated region
  $region14: #{encoder_gru_forward.1} parent=0 // pred_check
    _
  $region15: #{encoder_gru_forward.1} parent=0 // pred_check_branch
    %19 = sbr.rel (0) target = $region17
  $region16: #{encoder_gru_forward.1} parent=0 // pred_region
    _
  $region17: #{encoder_gru_forward.1} parent=0 // pred_fallthru
    _
  // Predicated region
  $region18: #{encoder_gru_forward.1} parent=0 // pred_check
    _
  $region19: #{encoder_gru_forward.1} parent=0 // pred_check_branch
    %21 = sbr.rel (0) target = $region21
  $region20: #{encoder_gru_forward.1} parent=0 // pred_region
    _
  $region21: #{encoder_gru_forward.1} parent=0 // pred_fallthru
    _
  %v22 = vld [vmem:[%s0] sm:$0xff]
  %v23 = vld [vmem:[%s0 + $0x8] sm:$0xff]
  %v24 = vld [vmem:[%s0 + $0x10] sm:$0xff]
  %v25 = vld [vmem:[%s0 + $0x18] sm:$0xff]
  %v26 = vld [vmem:[%s0 + $0x20] sm:$0xff]
  %v27 = vld [vmem:[%s0 + $0x28] sm:$0xff]
  %v28 = vld [vmem:[%s0 + $0x30] sm:$0xff]
  %v29 = vld [vmem:[%s0 + $0x38] sm:$0xff]
  %v30 = vlaneseq
  %v31 = vand.u32 %v30, 127
  %32 = vset.pattern.permute.xlu0 0
  %33 = vperm.xlu0 %32, %v22
  %v34 = vpop.permute.xlu0 %33
  %35 = vset.pattern.permute.xlu0 0
  %36 = vperm.xlu0 %35, %v23
  %v37 = vpop.permute.xlu0 %36
  %38 = vset.pattern.permute.xlu0 0
  %39 = vperm.xlu0 %38, %v24
  %v40 = vpop.permute.xlu0 %39
  %41 = vset.pattern.permute.xlu0 0
  %42 = vperm.xlu0 %41, %v25
  %v43 = vpop.permute.xlu0 %42
  %44 = vset.pattern.permute.xlu0 0
  %45 = vperm.xlu0 %44, %v26
  %v46 = vpop.permute.xlu0 %45
  %47 = vset.pattern.permute.xlu0 0
  %48 = vperm.xlu0 %47, %v27
  %v49 = vpop.permute.xlu0 %48
  %50 = vset.pattern.permute.xlu0 0
  %51 = vperm.xlu0 %50, %v28
  %v52 = vpop.permute.xlu0 %51
  %53 = vset.pattern.permute.xlu0 0
  %54 = vperm.xlu0 %53, %v29
  %v55 = vpop.permute.xlu0 %54
  %vm56 = vcmp.eq.s32.totalorder %v34, %v31
  %vm57 = vcmp.eq.s32.totalorder %v37, %v31
  %vm58 = vcmp.eq.s32.totalorder %v40, %v31
  %vm59 = vcmp.eq.s32.totalorder %v43, %v31
  %vm60 = vcmp.eq.s32.totalorder %v46, %v31
  %vm61 = vcmp.eq.s32.totalorder %v49, %v31
  %vm62 = vcmp.eq.s32.totalorder %v52, %v31
  %vm63 = vcmp.eq.s32.totalorder %v55, %v31
  %v64 = vsel %vm56, 1, 0
  %v65 = vsel %vm57, 1, 0
  %v66 = vsel %vm58, 1, 0
  %v67 = vsel %vm59, 1, 0
  %v68 = vsel %vm60, 1, 0
  %v69 = vsel %vm61, 1, 0
  %v70 = vsel %vm62, 1, 0
  %v71 = vsel %vm63, 1, 0
  %v72 = vcvt.s32.f32 %v64
  %v73 = vcvt.s32.f32 %v65
  %v74 = vcvt.s32.f32 %v66
  %v75 = vcvt.s32.f32 %v67
  %v76 = vcvt.s32.f32 %v68
  %v77 = vcvt.s32.f32 %v69
  %v78 = vcvt.s32.f32 %v70
  %v79 = vcvt.s32.f32 %v71
  %v80 = vld [vmem:[%s1] sm:$0xff]
  %v81 = vld [vmem:[%s1 + $0x8] sm:$0xff]
  %v82 = vld [vmem:[%s1 + $0x10] sm:$0xff]
  %v83 = vld [vmem:[%s1 + $0x18] sm:$0xff]
  %vm84 = vcmask 261120
  %v86 = vsel %vm84, %v72, 0
  %v89 = vsel %vm84, %v73, 0
  %v92 = vsel %vm84, %v74, 0
  %v95 = vsel %vm84, %v75, 0
  %v98 = vsel %vm84, %v76, 0
  %v101 = vsel %vm84, %v77, 0
  %v104 = vsel %vm84, %v78, 0
  %v107 = vsel %vm84, %v79, 0
  %109 = vmatprep.subr.mxu0 0.0
  %110 = vmatpush1.msra.mxu0 0.0
  %111 = vmatprep.subr.mxu0 0.0
  %112 = vmatpush1.msra.mxu0 0.0
  %113 = vmatprep.subr.mxu0 0.0
  %114 = vmatpush1.msra.mxu0 0.0
  %115 = vmatprep.subr.mxu0 0.0
  %116 = vmatpush1.msra.mxu0 0.0
  %117 = vmatprep.subr.mxu0 0.0
  %118 = vmatpush1.msra.mxu0 0.0
  %119 = vmatprep.subr.mxu0 0.0
  %120 = vmatpush1.msra.mxu0 0.0
  %121 = vmatprep.subr.mxu0 0.0
  %122 = vmatpush1.msra.mxu0 0.0
  %123 = vmatprep.subr.mxu0 0.0
  %124 = vmatpush1.msra.mxu0 0.0
  %125 = vmatprep.subr.mxu0 0.0
  %126 = vmatpush1.msra.mxu0 0.0
  %127 = vmatprep.subr.mxu0 0.0
  %128 = vmatpush1.msra.mxu0 0.0
  %129 = vmatprep.subr.mxu0 0.0
  %130 = vmatpush1.msra.mxu0 0.0
  %131 = vmatprep.subr.mxu0 0.0
  %132 = vmatpush1.msra.mxu0 0.0
  %133 = vmatprep.subr.mxu0 0.0
  %134 = vmatpush1.msra.mxu0 %v83
  %135 = vmatprep.subr.mxu0 0.0
  %136 = vmatpush1.msra.mxu0 %v82
  %137 = vmatprep.subr.mxu0 0.0
  %138 = vmatpush1.msra.mxu0 %v81
  %139 = vmatprep.subr.mxu0 0.0
  %140 = vmatpush1.msra.mxu0 %v80
  %141 = vmatprep.subr.mxu0 0.0
  %142 = vmatpush2.msra.mxu0 0.0
  %143 = vmatprep.subr.mxu0 0.0
  %144 = vmatpush2.msra.mxu0 0.0
  %145 = vmatprep.subr.mxu0 0.0
  %146 = vmatpush2.msra.mxu0 0.0
  %147 = vmatprep.subr.mxu0 0.0
  %148 = vmatpush2.msra.mxu0 0.0
  %149 = vmatprep.subr.mxu0 0.0
  %150 = vmatpush2.msra.mxu0 0.0
  %151 = vmatprep.subr.mxu0 0.0
  %152 = vmatpush2.msra.mxu0 0.0
  %153 = vmatprep.subr.mxu0 0.0
  %154 = vmatpush2.msra.mxu0 0.0
  %155 = vmatprep.subr.mxu0 0.0
  %156 = vmatpush2.msra.mxu0 0.0
  %157 = vmatprep.subr.mxu0 0.0
  %158 = vmatpush2.msra.mxu0 0.0
  %159 = vmatprep.subr.mxu0 0.0
  %160 = vmatpush2.msra.mxu0 0.0
  %161 = vmatprep.subr.mxu0 0.0
  %162 = vmatpush2.msra.mxu0 0.0
  %163 = vmatprep.subr.mxu0 0.0
  %164 = vmatpush2.msra.mxu0 0.0
  %165 = vmatprep.subr.mxu0 0.0
  %166 = vmatpush2.msra.mxu0 0.0
  %167 = vmatprep.subr.mxu0 0.0
  %168 = vmatpush2.msra.mxu0 0.0
  %169 = vmatprep.subr.mxu0 0.0
  %170 = vmatpush2.msra.mxu0 0.0
  %171 = vmatprep.subr.mxu0 0.0
  %172 = vmatpush2.msra.mxu0 0.0
  %173 = vmatprep.mubr.f32.mxu0 0.0
  %174 = vmatmul.mubr.f32.gmra.mxu0 %v86
  %v175 = vpop.f32.mrf.mxu0
  %v176 = vadd.f32 0.0, %v175
  %v177 = vpop.f32.mrf.mxu0
  %178 = vmatprep.mubr.f32.mxu0 0.0
  %179 = vmatmul.mubr.f32.gmra.mxu0 %v89
  %v180 = vpop.f32.mrf.mxu0
  %v181 = vadd.f32 0.0, %v180
  %v182 = vpop.f32.mrf.mxu0
  %183 = vmatprep.mubr.f32.mxu0 0.0
  %184 = vmatmul.mubr.f32.gmra.mxu0 %v92
  %v185 = vpop.f32.mrf.mxu0
  %v186 = vadd.f32 0.0, %v185
  %v187 = vpop.f32.mrf.mxu0
  %188 = vmatprep.mubr.f32.mxu0 0.0
  %189 = vmatmul.mubr.f32.gmra.mxu0 %v95
  %v190 = vpop.f32.mrf.mxu0
  %v191 = vadd.f32 0.0, %v190
  %v192 = vpop.f32.mrf.mxu0
  %193 = vmatprep.mubr.f32.mxu0 0.0
  %194 = vmatmul.mubr.f32.gmra.mxu0 %v98
  %v195 = vpop.f32.mrf.mxu0
  %v196 = vadd.f32 0.0, %v195
  %v197 = vpop.f32.mrf.mxu0
  %198 = vmatprep.mubr.f32.mxu0 0.0
  %199 = vmatmul.mubr.f32.gmra.mxu0 %v101
  %v200 = vpop.f32.mrf.mxu0
  %v201 = vadd.f32 0.0, %v200
  %v202 = vpop.f32.mrf.mxu0
  %203 = vmatprep.mubr.f32.mxu0 0.0
  %204 = vmatmul.mubr.f32.gmra.mxu0 %v104
  %v205 = vpop.f32.mrf.mxu0
  %v206 = vadd.f32 0.0, %v205
  %v207 = vpop.f32.mrf.mxu0
  %208 = vmatprep.mubr.f32.mxu0 0.0
  %209 = vmatmul.mubr.f32.gmra.mxu0 %v107
  %v210 = vpop.f32.mrf.mxu0
  %v211 = vadd.f32 0.0, %v210
  %v212 = vpop.f32.mrf.mxu0
  %213 = vdwg.mxu0
  %v214 = vld [vmem:[%s2] sm:$0xff]
  %v215 = vld [vmem:[%s2 + $0x8] sm:$0xff]
  %v216 = vld [vmem:[%s4] sm:$0x1]
  %v218 = vlaneseq
  %v219 = vshrl.u32 %v218, 7
  %v220 = vsub.s32 0, %v219
  %v221 = vrot.slane %v216, %v220
  %vm223 = vcmask 130048
  %v225 = vsel %vm223, %v176, 0
  %v228 = vsel %vm223, %v181, 0
  %v231 = vsel %vm223, %v186, 0
  %v234 = vsel %vm223, %v191, 0
  %v237 = vsel %vm223, %v196, 0
  %v240 = vsel %vm223, %v201, 0
  %v243 = vsel %vm223, %v206, 0
  %v246 = vsel %vm223, %v211, 0
  %248 = vmatprep.subr.mxu0 0.0
  %249 = vmatpush1.msra.mxu0 0.0
  %250 = vmatprep.subr.mxu0 0.0
  %251 = vmatpush1.msra.mxu0 0.0
  %252 = vmatprep.subr.mxu0 0.0
  %253 = vmatpush1.msra.mxu0 0.0
  %254 = vmatprep.subr.mxu0 0.0
  %255 = vmatpush1.msra.mxu0 0.0
  %256 = vmatprep.subr.mxu0 0.0
  %257 = vmatpush1.msra.mxu0 0.0
  %258 = vmatprep.subr.mxu0 0.0
  %259 = vmatpush1.msra.mxu0 0.0
  %260 = vmatprep.subr.mxu0 0.0
  %261 = vmatpush1.msra.mxu0 0.0
  %262 = vmatprep.subr.mxu0 0.0
  %263 = vmatpush1.msra.mxu0 0.0
  %264 = vmatprep.subr.mxu0 0.0
  %265 = vmatpush1.msra.mxu0 0.0
  %266 = vmatprep.subr.mxu0 0.0
  %267 = vmatpush1.msra.mxu0 0.0
  %268 = vmatprep.subr.mxu0 0.0
  %269 = vmatpush1.msra.mxu0 0.0
  %270 = vmatprep.subr.mxu0 0.0
  %271 = vmatpush1.msra.mxu0 0.0
  %272 = vmatprep.subr.mxu0 0.0
  %273 = vmatpush1.msra.mxu0 0.0
  %274 = vmatprep.subr.mxu0 0.0
  %275 = vmatpush1.msra.mxu0 0.0
  %276 = vmatprep.subr.mxu0 0.0
  %277 = vmatpush1.msra.mxu0 %v215
  %278 = vmatprep.subr.mxu0 0.0
  %279 = vmatpush1.msra.mxu0 %v214
  %280 = vmatprep.subr.mxu0 0.0
  %281 = vmatpush2.msra.mxu0 0.0
  %282 = vmatprep.subr.mxu0 0.0
  %283 = vmatpush2.msra.mxu0 0.0
  %284 = vmatprep.subr.mxu0 0.0
  %285 = vmatpush2.msra.mxu0 0.0
  %286 = vmatprep.subr.mxu0 0.0
  %287 = vmatpush2.msra.mxu0 0.0
  %288 = vmatprep.subr.mxu0 0.0
  %289 = vmatpush2.msra.mxu0 0.0
  %290 = vmatprep.subr.mxu0 0.0
  %291 = vmatpush2.msra.mxu0 0.0
  %292 = vmatprep.subr.mxu0 0.0
  %293 = vmatpush2.msra.mxu0 0.0
  %294 = vmatprep.subr.mxu0 0.0
  %295 = vmatpush2.msra.mxu0 0.0
  %296 = vmatprep.subr.mxu0 0.0
  %297 = vmatpush2.msra.mxu0 0.0
  %298 = vmatprep.subr.mxu0 0.0
  %299 = vmatpush2.msra.mxu0 0.0
  %300 = vmatprep.subr.mxu0 0.0
  %301 = vmatpush2.msra.mxu0 0.0
  %302 = vmatprep.subr.mxu0 0.0
  %303 = vmatpush2.msra.mxu0 0.0
  %304 = vmatprep.subr.mxu0 0.0
  %305 = vmatpush2.msra.mxu0 0.0
  %306 = vmatprep.subr.mxu0 0.0
  %307 = vmatpush2.msra.mxu0 0.0
  %308 = vmatprep.subr.mxu0 0.0
  %309 = vmatpush2.msra.mxu0 0.0
  %310 = vmatprep.subr.mxu0 0.0
  %311 = vmatpush2.msra.mxu0 0.0
  %312 = vmatprep.mubr.f32.mxu0 0.0
  %313 = vmatmul.mubr.f32.gmra.mxu0 %v225
  %v314 = vpop.f32.mrf.mxu0
  %v315 = vadd.f32 %v221, %v314
  %v316 = vpop.f32.mrf.mxu0
  %317 = vmatprep.mubr.f32.mxu0 0.0
  %318 = vmatmul.mubr.f32.gmra.mxu0 %v228
  %v319 = vpop.f32.mrf.mxu0
  %v320 = vadd.f32 %v221, %v319
  %v321 = vpop.f32.mrf.mxu0
  %322 = vmatprep.mubr.f32.mxu0 0.0
  %323 = vmatmul.mubr.f32.gmra.mxu0 %v231
  %v324 = vpop.f32.mrf.mxu0
  %v325 = vadd.f32 %v221, %v324
  %v326 = vpop.f32.mrf.mxu0
  %327 = vmatprep.mubr.f32.mxu0 0.0
  %328 = vmatmul.mubr.f32.gmra.mxu0 %v234
  %v329 = vpop.f32.mrf.mxu0
  %v330 = vadd.f32 %v221, %v329
  %v331 = vpop.f32.mrf.mxu0
  %332 = vmatprep.mubr.f32.mxu0 0.0
  %333 = vmatmul.mubr.f32.gmra.mxu0 %v237
  %v334 = vpop.f32.mrf.mxu0
  %v335 = vadd.f32 %v221, %v334
  %v336 = vpop.f32.mrf.mxu0
  %337 = vmatprep.mubr.f32.mxu0 0.0
  %338 = vmatmul.mubr.f32.gmra.mxu0 %v240
  %v339 = vpop.f32.mrf.mxu0
  %v340 = vadd.f32 %v221, %v339
  %v341 = vpop.f32.mrf.mxu0
  %342 = vmatprep.mubr.f32.mxu0 0.0
  %343 = vmatmul.mubr.f32.gmra.mxu0 %v243
  %v344 = vpop.f32.mrf.mxu0
  %v345 = vadd.f32 %v221, %v344
  %v346 = vpop.f32.mrf.mxu0
  %347 = vmatprep.mubr.f32.mxu0 0.0
  %348 = vmatmul.mubr.f32.gmra.mxu0 %v246
  %v349 = vpop.f32.mrf.mxu0
  %v350 = vadd.f32 %v221, %v349
  %v351 = vpop.f32.mrf.mxu0
  %352 = vdwg.mxu0
  %v353 = vld [vmem:[%s3] sm:$0xff]
  %v354 = vld [vmem:[%s3 + $0x8] sm:$0xff]
  %v355 = vld [vmem:[%s3 + $0x10] sm:$0xff]
  %v356 = vld [vmem:[%s3 + $0x18] sm:$0xff]
  %v358 = vsel %vm84, 0.0, 0
  %360 = vmatprep.subr.mxu0 0.0
  %361 = vmatpush1.msra.mxu0 0.0
  %362 = vmatprep.subr.mxu0 0.0
  %363 = vmatpush1.msra.mxu0 0.0
  %364 = vmatprep.subr.mxu0 0.0
  %365 = vmatpush1.msra.mxu0 0.0
  %366 = vmatprep.subr.mxu0 0.0
  %367 = vmatpush1.msra.mxu0 0.0
  %368 = vmatprep.subr.mxu0 0.0
  %369 = vmatpush1.msra.mxu0 0.0
  %370 = vmatprep.subr.mxu0 0.0
  %371 = vmatpush1.msra.mxu0 0.0
  %372 = vmatprep.subr.mxu0 0.0
  %373 = vmatpush1.msra.mxu0 0.0
  %374 = vmatprep.subr.mxu0 0.0
  %375 = vmatpush1.msra.mxu0 0.0
  %376 = vmatprep.subr.mxu0 0.0
  %377 = vmatpush1.msra.mxu0 0.0
  %378 = vmatprep.subr.mxu0 0.0
  %379 = vmatpush1.msra.mxu0 0.0
  %380 = vmatprep.subr.mxu0 0.0
  %381 = vmatpush1.msra.mxu0 0.0
  %382 = vmatprep.subr.mxu0 0.0
  %383 = vmatpush1.msra.mxu0 0.0
  %384 = vmatprep.subr.mxu0 0.0
  %385 = vmatpush1.msra.mxu0 %v356
  %386 = vmatprep.subr.mxu0 0.0
  %387 = vmatpush1.msra.mxu0 %v355
  %388 = vmatprep.subr.mxu0 0.0
  %389 = vmatpush1.msra.mxu0 %v354
  %390 = vmatprep.subr.mxu0 0.0
  %391 = vmatpush1.msra.mxu0 %v353
  %392 = vmatprep.subr.mxu0 0.0
  %393 = vmatpush2.msra.mxu0 0.0
  %394 = vmatprep.subr.mxu0 0.0
  %395 = vmatpush2.msra.mxu0 0.0
  %396 = vmatprep.subr.mxu0 0.0
  %397 = vmatpush2.msra.mxu0 0.0
  %398 = vmatprep.subr.mxu0 0.0
  %399 = vmatpush2.msra.mxu0 0.0
  %400 = vmatprep.subr.mxu0 0.0
  %401 = vmatpush2.msra.mxu0 0.0
  %402 = vmatprep.subr.mxu0 0.0
  %403 = vmatpush2.msra.mxu0 0.0
  %404 = vmatprep.subr.mxu0 0.0
  %405 = vmatpush2.msra.mxu0 0.0
  %406 = vmatprep.subr.mxu0 0.0
  %407 = vmatpush2.msra.mxu0 0.0
  %408 = vmatprep.subr.mxu0 0.0
  %409 = vmatpush2.msra.mxu0 0.0
  %410 = vmatprep.subr.mxu0 0.0
  %411 = vmatpush2.msra.mxu0 0.0
  %412 = vmatprep.subr.mxu0 0.0
  %413 = vmatpush2.msra.mxu0 0.0
  %414 = vmatprep.subr.mxu0 0.0
  %415 = vmatpush2.msra.mxu0 0.0
  %416 = vmatprep.subr.mxu0 0.0
  %417 = vmatpush2.msra.mxu0 0.0
  %418 = vmatprep.subr.mxu0 0.0
  %419 = vmatpush2.msra.mxu0 0.0
  %420 = vmatprep.subr.mxu0 0.0
  %421 = vmatpush2.msra.mxu0 0.0
  %422 = vmatprep.subr.mxu0 0.0
  %423 = vmatpush2.msra.mxu0 0.0
  %424 = vmatprep.mubr.f32.mxu0 0.0
  %425 = vmatmul.mubr.f32.gmra.mxu0 %v358
  %v426 = vpop.f32.mrf.mxu0
  %v427 = vadd.f32 0.0, %v426
  %v428 = vpop.f32.mrf.mxu0
  %429 = vdwg.mxu0
  %v430 = vadd.f32 %v315, %v427
  %v431 = vxor.u32 %v430, 2147483648
  %v432 = vmul.f32 %v431, 1.442695
  %v433 = vpow.pop %v432
  %v434 = vadd.f32 %v433, 1.0
  %v435 = vrcp.pop %v434
  %v436 = vmul.f32 1.0, %v435
  %437 = vrot.lane.b32.xlu0 %v221, 96
  %v438 = vpop.permute.xlu0 %437
  %v440 = vadd.f32 %v427, %v438
  %442 = vrot.lane.b32.xlu0 %v440, 64
  %v443 = vpop.permute.xlu0 %442
  %v445 = vmul.f32 %v436, %v443
  %447 = vrot.lane.b32.xlu0 %v445, 64
  %v448 = vpop.permute.xlu0 %447
  %v450 = vadd.f32 %v315, %v448
  %v451 = vtanh.pop %v450
  %v452 = vsub.f32 1.0, %v436
  %454 = vrot.lane.b32.xlu0 %v451, 96
  %v455 = vpop.permute.xlu0 %454
  %v457 = vmul.f32 %v452, %v455
  %v458 = vmul.f32 %v436, 0.0
  %v459 = vadd.f32 %v457, %v458
  %461 = vrot.lane.b32.xlu0 %v459, 96
  %v462 = vpop.permute.xlu0 %461
  %464 = vst.msk [vmem:[%s5] sm:$0xff] %vm84, %v462
  %v465 = vsel %vm84, %v462, 0
  %467 = vmatprep.subr.mxu0 0.0
  %468 = vmatpush1.msra.mxu0 0.0
  %469 = vmatprep.subr.mxu0 0.0
  %470 = vmatpush1.msra.mxu0 0.0
  %471 = vmatprep.subr.mxu0 0.0
  %472 = vmatpush1.msra.mxu0 0.0
  %473 = vmatprep.subr.mxu0 0.0
  %474 = vmatpush1.msra.mxu0 0.0
  %475 = vmatprep.subr.mxu0 0.0
  %476 = vmatpush1.msra.mxu0 0.0
  %477 = vmatprep.subr.mxu0 0.0
  %478 = vmatpush1.msra.mxu0 0.0
  %479 = vmatprep.subr.mxu0 0.0
  %480 = vmatpush1.msra.mxu0 0.0
  %481 = vmatprep.subr.mxu0 0.0
  %482 = vmatpush1.msra.mxu0 0.0
  %483 = vmatprep.subr.mxu0 0.0
  %484 = vmatpush1.msra.mxu0 0.0
  %485 = vmatprep.subr.mxu0 0.0
  %486 = vmatpush1.msra.mxu0 0.0
  %487 = vmatprep.subr.mxu0 0.0
  %488 = vmatpush1.msra.mxu0 0.0
  %489 = vmatprep.subr.mxu0 0.0
  %490 = vmatpush1.msra.mxu0 0.0
  %491 = vmatprep.subr.mxu0 0.0
  %492 = vmatpush1.msra.mxu0 %v356
  %493 = vmatprep.subr.mxu0 0.0
  %494 = vmatpush1.msra.mxu0 %v355
  %495 = vmatprep.subr.mxu0 0.0
  %496 = vmatpush1.msra.mxu0 %v354
  %497 = vmatprep.subr.mxu0 0.0
  %498 = vmatpush1.msra.mxu0 %v353
  %499 = vmatprep.subr.mxu0 0.0
  %500 = vmatpush2.msra.mxu0 0.0
  %501 = vmatprep.subr.mxu0 0.0
  %502 = vmatpush2.msra.mxu0 0.0
  %503 = vmatprep.subr.mxu0 0.0
  %504 = vmatpush2.msra.mxu0 0.0
  %505 = vmatprep.subr.mxu0 0.0
  %506 = vmatpush2.msra.mxu0 0.0
  %507 = vmatprep.subr.mxu0 0.0
  %508 = vmatpush2.msra.mxu0 0.0
  %509 = vmatprep.subr.mxu0 0.0
  %510 = vmatpush2.msra.mxu0 0.0
  %511 = vmatprep.subr.mxu0 0.0
  %512 = vmatpush2.msra.mxu0 0.0
  %513 = vmatprep.subr.mxu0 0.0
  %514 = vmatpush2.msra.mxu0 0.0
  %515 = vmatprep.subr.mxu0 0.0
  %516 = vmatpush2.msra.mxu0 0.0
  %517 = vmatprep.subr.mxu0 0.0
  %518 = vmatpush2.msra.mxu0 0.0
  %519 = vmatprep.subr.mxu0 0.0
  %520 = vmatpush2.msra.mxu0 0.0
  %521 = vmatprep.subr.mxu0 0.0
  %522 = vmatpush2.msra.mxu0 0.0
  %523 = vmatprep.subr.mxu0 0.0
  %524 = vmatpush2.msra.mxu0 0.0
  %525 = vmatprep.subr.mxu0 0.0
  %526 = vmatpush2.msra.mxu0 0.0
  %527 = vmatprep.subr.mxu0 0.0
  %528 = vmatpush2.msra.mxu0 0.0
  %529 = vmatprep.subr.mxu0 0.0
  %530 = vmatpush2.msra.mxu0 0.0
  %531 = vmatprep.mubr.f32.mxu0 0.0
  %532 = vmatmul.mubr.f32.gmra.mxu0 %v465
  %v533 = vpop.f32.mrf.mxu0
  %v534 = vadd.f32 0.0, %v533
  %v535 = vpop.f32.mrf.mxu0
  %536 = vdwg.mxu0
  %v537 = vadd.f32 %v320, %v534
  %v538 = vxor.u32 %v537, 2147483648
  %v539 = vmul.f32 %v538, 1.442695
  %v540 = vpow.pop %v539
  %v541 = vadd.f32 %v540, 1.0
  %v542 = vrcp.pop %v541
  %v543 = vmul.f32 1.0, %v542
  %v544 = vadd.f32 %v534, %v438
  %546 = vrot.lane.b32.xlu0 %v544, 64
  %v547 = vpop.permute.xlu0 %546
  %v549 = vmul.f32 %v543, %v547
  %551 = vrot.lane.b32.xlu0 %v549, 64
  %v552 = vpop.permute.xlu0 %551
  %v554 = vadd.f32 %v320, %v552
  %v555 = vtanh.pop %v554
  %v556 = vsub.f32 1.0, %v543
  %558 = vrot.lane.b32.xlu0 %v555, 96
  %v559 = vpop.permute.xlu0 %558
  %v561 = vmul.f32 %v556, %v559
  %v562 = vmul.f32 %v543, %v459
  %v563 = vadd.f32 %v561, %v562
  %565 = vrot.lane.b32.xlu0 %v563, 96
  %v566 = vpop.permute.xlu0 %565
  %s568 = scalar_lea.vmem %s5, 8
  %569 = vst.msk [vmem:[%s568] sm:$0xff] %vm84, %v566
  %v570 = vsel %vm84, %v566, 0
  %572 = vmatprep.subr.mxu0 0.0
  %573 = vmatpush1.msra.mxu0 0.0
  %574 = vmatprep.subr.mxu0 0.0
  %575 = vmatpush1.msra.mxu0 0.0
  %576 = vmatprep.subr.mxu0 0.0
  %577 = vmatpush1.msra.mxu0 0.0
  %578 = vmatprep.subr.mxu0 0.0
  %579 = vmatpush1.msra.mxu0 0.0
  %580 = vmatprep.subr.mxu0 0.0
  %581 = vmatpush1.msra.mxu0 0.0
  %582 = vmatprep.subr.mxu0 0.0
  %583 = vmatpush1.msra.mxu0 0.0
  %584 = vmatprep.subr.mxu0 0.0
  %585 = vmatpush1.msra.mxu0 0.0
  %586 = vmatprep.subr.mxu0 0.0
  %587 = vmatpush1.msra.mxu0 0.0
  %588 = vmatprep.subr.mxu0 0.0
  %589 = vmatpush1.msra.mxu0 0.0
  %590 = vmatprep.subr.mxu0 0.0
  %591 = vmatpush1.msra.mxu0 0.0
  %592 = vmatprep.subr.mxu0 0.0
  %593 = vmatpush1.msra.mxu0 0.0
  %594 = vmatprep.subr.mxu0 0.0
  %595 = vmatpush1.msra.mxu0 0.0
  %596 = vmatprep.subr.mxu0 0.0
  %597 = vmatpush1.msra.mxu0 %v356
  %598 = vmatprep.subr.mxu0 0.0
  %599 = vmatpush1.msra.mxu0 %v355
  %600 = vmatprep.subr.mxu0 0.0
  %601 = vmatpush1.msra.mxu0 %v354
  %602 = vmatprep.subr.mxu0 0.0
  %603 = vmatpush1.msra.mxu0 %v353
  %604 = vmatprep.subr.mxu0 0.0
  %605 = vmatpush2.msra.mxu0 0.0
  %606 = vmatprep.subr.mxu0 0.0
  %607 = vmatpush2.msra.mxu0 0.0
  %608 = vmatprep.subr.mxu0 0.0
  %609 = vmatpush2.msra.mxu0 0.0
  %610 = vmatprep.subr.mxu0 0.0
  %611 = vmatpush2.msra.mxu0 0.0
  %612 = vmatprep.subr.mxu0 0.0
  %613 = vmatpush2.msra.mxu0 0.0
  %614 = vmatprep.subr.mxu0 0.0
  %615 = vmatpush2.msra.mxu0 0.0
  %616 = vmatprep.subr.mxu0 0.0
  %617 = vmatpush2.msra.mxu0 0.0
  %618 = vmatprep.subr.mxu0 0.0
  %619 = vmatpush2.msra.mxu0 0.0
  %620 = vmatprep.subr.mxu0 0.0
  %621 = vmatpush2.msra.mxu0 0.0
  %622 = vmatprep.subr.mxu0 0.0
  %623 = vmatpush2.msra.mxu0 0.0
  %624 = vmatprep.subr.mxu0 0.0
  %625 = vmatpush2.msra.mxu0 0.0
  %626 = vmatprep.subr.mxu0 0.0
  %627 = vmatpush2.msra.mxu0 0.0
  %628 = vmatprep.subr.mxu0 0.0
  %629 = vmatpush2.msra.mxu0 0.0
  %630 = vmatprep.subr.mxu0 0.0
  %631 = vmatpush2.msra.mxu0 0.0
  %632 = vmatprep.subr.mxu0 0.0
  %633 = vmatpush2.msra.mxu0 0.0
  %634 = vmatprep.subr.mxu0 0.0
  %635 = vmatpush2.msra.mxu0 0.0
  %636 = vmatprep.mubr.f32.mxu0 0.0
  %637 = vmatmul.mubr.f32.gmra.mxu0 %v570
  %v638 = vpop.f32.mrf.mxu0
  %v639 = vadd.f32 0.0, %v638
  %v640 = vpop.f32.mrf.mxu0
  %641 = vdwg.mxu0
  %v642 = vadd.f32 %v325, %v639
  %v643 = vxor.u32 %v642, 2147483648
  %v644 = vmul.f32 %v643, 1.442695
  %v645 = vpow.pop %v644
  %v646 = vadd.f32 %v645, 1.0
  %v647 = vrcp.pop %v646
  %v648 = vmul.f32 1.0, %v647
  %v649 = vadd.f32 %v639, %v438
  %651 = vrot.lane.b32.xlu0 %v649, 64
  %v652 = vpop.permute.xlu0 %651
  %v654 = vmul.f32 %v648, %v652
  %656 = vrot.lane.b32.xlu0 %v654, 64
  %v657 = vpop.permute.xlu0 %656
  %v659 = vadd.f32 %v325, %v657
  %v660 = vtanh.pop %v659
  %v661 = vsub.f32 1.0, %v648
  %663 = vrot.lane.b32.xlu0 %v660, 96
  %v664 = vpop.permute.xlu0 %663
  %v666 = vmul.f32 %v661, %v664
  %v667 = vmul.f32 %v648, %v563
  %v668 = vadd.f32 %v666, %v667
  %670 = vrot.lane.b32.xlu0 %v668, 96
  %v671 = vpop.permute.xlu0 %670
  %s673 = scalar_lea.vmem %s5, 16
  %674 = vst.msk [vmem:[%s673] sm:$0xff] %vm84, %v671
  %v675 = vsel %vm84, %v671, 0
  %677 = vmatprep.subr.mxu0 0.0
  %678 = vmatpush1.msra.mxu0 0.0
  %679 = vmatprep.subr.mxu0 0.0
  %680 = vmatpush1.msra.mxu0 0.0
  %681 = vmatprep.subr.mxu0 0.0
  %682 = vmatpush1.msra.mxu0 0.0
  %683 = vmatprep.subr.mxu0 0.0
  %684 = vmatpush1.msra.mxu0 0.0
  %685 = vmatprep.subr.mxu0 0.0
  %686 = vmatpush1.msra.mxu0 0.0
  %687 = vmatprep.subr.mxu0 0.0
  %688 = vmatpush1.msra.mxu0 0.0
  %689 = vmatprep.subr.mxu0 0.0
  %690 = vmatpush1.msra.mxu0 0.0
  %691 = vmatprep.subr.mxu0 0.0
  %692 = vmatpush1.msra.mxu0 0.0
  %693 = vmatprep.subr.mxu0 0.0
  %694 = vmatpush1.msra.mxu0 0.0
  %695 = vmatprep.subr.mxu0 0.0
  %696 = vmatpush1.msra.mxu0 0.0
  %697 = vmatprep.subr.mxu0 0.0
  %698 = vmatpush1.msra.mxu0 0.0
  %699 = vmatprep.subr.mxu0 0.0
  %700 = vmatpush1.msra.mxu0 0.0
  %701 = vmatprep.subr.mxu0 0.0
  %702 = vmatpush1.msra.mxu0 %v356
  %703 = vmatprep.subr.mxu0 0.0
  %704 = vmatpush1.msra.mxu0 %v355
  %705 = vmatprep.subr.mxu0 0.0
  %706 = vmatpush1.msra.mxu0 %v354
  %707 = vmatprep.subr.mxu0 0.0
  %708 = vmatpush1.msra.mxu0 %v353
  %709 = vmatprep.subr.mxu0 0.0
  %710 = vmatpush2.msra.mxu0 0.0
  %711 = vmatprep.subr.mxu0 0.0
  %712 = vmatpush2.msra.mxu0 0.0
  %713 = vmatprep.subr.mxu0 0.0
  %714 = vmatpush2.msra.mxu0 0.0
  %715 = vmatprep.subr.mxu0 0.0
  %716 = vmatpush2.msra.mxu0 0.0
  %717 = vmatprep.subr.mxu0 0.0
  %718 = vmatpush2.msra.mxu0 0.0
  %719 = vmatprep.subr.mxu0 0.0
  %720 = vmatpush2.msra.mxu0 0.0
  %721 = vmatprep.subr.mxu0 0.0
  %722 = vmatpush2.msra.mxu0 0.0
  %723 = vmatprep.subr.mxu0 0.0
  %724 = vmatpush2.msra.mxu0 0.0
  %725 = vmatprep.subr.mxu0 0.0
  %726 = vmatpush2.msra.mxu0 0.0
  %727 = vmatprep.subr.mxu0 0.0
  %728 = vmatpush2.msra.mxu0 0.0
  %729 = vmatprep.subr.mxu0 0.0
  %730 = vmatpush2.msra.mxu0 0.0
  %731 = vmatprep.subr.mxu0 0.0
  %732 = vmatpush2.msra.mxu0 0.0
  %733 = vmatprep.subr.mxu0 0.0
  %734 = vmatpush2.msra.mxu0 0.0
  %735 = vmatprep.subr.mxu0 0.0
  %736 = vmatpush2.msra.mxu0 0.0
  %737 = vmatprep.subr.mxu0 0.0
  %738 = vmatpush2.msra.mxu0 0.0
  %739 = vmatprep.subr.mxu0 0.0
  %740 = vmatpush2.msra.mxu0 0.0
  %741 = vmatprep.mubr.f32.mxu0 0.0
  %742 = vmatmul.mubr.f32.gmra.mxu0 %v675
  %v743 = vpop.f32.mrf.mxu0
  %v744 = vadd.f32 0.0, %v743
  %v745 = vpop.f32.mrf.mxu0
  %746 = vdwg.mxu0
  %v747 = vadd.f32 %v330, %v744
  %v748 = vxor.u32 %v747, 2147483648
  %v749 = vmul.f32 %v748, 1.442695
  %v750 = vpow.pop %v749
  %v751 = vadd.f32 %v750, 1.0
  %v752 = vrcp.pop %v751
  %v753 = vmul.f32 1.0, %v752
  %v754 = vadd.f32 %v744, %v438
  %756 = vrot.lane.b32.xlu0 %v754, 64
  %v757 = vpop.permute.xlu0 %756
  %v759 = vmul.f32 %v753, %v757
  %761 = vrot.lane.b32.xlu0 %v759, 64
  %v762 = vpop.permute.xlu0 %761
  %v764 = vadd.f32 %v330, %v762
  %v765 = vtanh.pop %v764
  %v766 = vsub.f32 1.0, %v753
  %768 = vrot.lane.b32.xlu0 %v765, 96
  %v769 = vpop.permute.xlu0 %768
  %v771 = vmul.f32 %v766, %v769
  %v772 = vmul.f32 %v753, %v668
  %v773 = vadd.f32 %v771, %v772
  %775 = vrot.lane.b32.xlu0 %v773, 96
  %v776 = vpop.permute.xlu0 %775
  %s778 = scalar_lea.vmem %s5, 24
  %779 = vst.msk [vmem:[%s778] sm:$0xff] %vm84, %v776
  %v780 = vsel %vm84, %v776, 0
  %782 = vmatprep.subr.mxu0 0.0
  %783 = vmatpush1.msra.mxu0 0.0
  %784 = vmatprep.subr.mxu0 0.0
  %785 = vmatpush1.msra.mxu0 0.0
  %786 = vmatprep.subr.mxu0 0.0
  %787 = vmatpush1.msra.mxu0 0.0
  %788 = vmatprep.subr.mxu0 0.0
  %789 = vmatpush1.msra.mxu0 0.0
  %790 = vmatprep.subr.mxu0 0.0
  %791 = vmatpush1.msra.mxu0 0.0
  %792 = vmatprep.subr.mxu0 0.0
  %793 = vmatpush1.msra.mxu0 0.0
  %794 = vmatprep.subr.mxu0 0.0
  %795 = vmatpush1.msra.mxu0 0.0
  %796 = vmatprep.subr.mxu0 0.0
  %797 = vmatpush1.msra.mxu0 0.0
  %798 = vmatprep.subr.mxu0 0.0
  %799 = vmatpush1.msra.mxu0 0.0
  %800 = vmatprep.subr.mxu0 0.0
  %801 = vmatpush1.msra.mxu0 0.0
  %802 = vmatprep.subr.mxu0 0.0
  %803 = vmatpush1.msra.mxu0 0.0
  %804 = vmatprep.subr.mxu0 0.0
  %805 = vmatpush1.msra.mxu0 0.0
  %806 = vmatprep.subr.mxu0 0.0
  %807 = vmatpush1.msra.mxu0 %v356
  %808 = vmatprep.subr.mxu0 0.0
  %809 = vmatpush1.msra.mxu0 %v355
  %810 = vmatprep.subr.mxu0 0.0
  %811 = vmatpush1.msra.mxu0 %v354
  %812 = vmatprep.subr.mxu0 0.0
  %813 = vmatpush1.msra.mxu0 %v353
  %814 = vmatprep.subr.mxu0 0.0
  %815 = vmatpush2.msra.mxu0 0.0
  %816 = vmatprep.subr.mxu0 0.0
  %817 = vmatpush2.msra.mxu0 0.0
  %818 = vmatprep.subr.mxu0 0.0
  %819 = vmatpush2.msra.mxu0 0.0
  %820 = vmatprep.subr.mxu0 0.0
  %821 = vmatpush2.msra.mxu0 0.0
  %822 = vmatprep.subr.mxu0 0.0
  %823 = vmatpush2.msra.mxu0 0.0
  %824 = vmatprep.subr.mxu0 0.0
  %825 = vmatpush2.msra.mxu0 0.0
  %826 = vmatprep.subr.mxu0 0.0
  %827 = vmatpush2.msra.mxu0 0.0
  %828 = vmatprep.subr.mxu0 0.0
  %829 = vmatpush2.msra.mxu0 0.0
  %830 = vmatprep.subr.mxu0 0.0
  %831 = vmatpush2.msra.mxu0 0.0
  %832 = vmatprep.subr.mxu0 0.0
  %833 = vmatpush2.msra.mxu0 0.0
  %834 = vmatprep.subr.mxu0 0.0
  %835 = vmatpush2.msra.mxu0 0.0
  %836 = vmatprep.subr.mxu0 0.0
  %837 = vmatpush2.msra.mxu0 0.0
  %838 = vmatprep.subr.mxu0 0.0
  %839 = vmatpush2.msra.mxu0 0.0
  %840 = vmatprep.subr.mxu0 0.0
  %841 = vmatpush2.msra.mxu0 0.0
  %842 = vmatprep.subr.mxu0 0.0
  %843 = vmatpush2.msra.mxu0 0.0
  %844 = vmatprep.subr.mxu0 0.0
  %845 = vmatpush2.msra.mxu0 0.0
  %846 = vmatprep.mubr.f32.mxu0 0.0
  %847 = vmatmul.mubr.f32.gmra.mxu0 %v780
  %v848 = vpop.f32.mrf.mxu0
  %v849 = vadd.f32 0.0, %v848
  %v850 = vpop.f32.mrf.mxu0
  %851 = vdwg.mxu0
  %v852 = vadd.f32 %v335, %v849
  %v853 = vxor.u32 %v852, 2147483648
  %v854 = vmul.f32 %v853, 1.442695
  %v855 = vpow.pop %v854
  %v856 = vadd.f32 %v855, 1.0
  %v857 = vrcp.pop %v856
  %v858 = vmul.f32 1.0, %v857
  %v859 = vadd.f32 %v849, %v438
  %861 = vrot.lane.b32.xlu0 %v859, 64
  %v862 = vpop.permute.xlu0 %861
  %v864 = vmul.f32 %v858, %v862
  %866 = vrot.lane.b32.xlu0 %v864, 64
  %v867 = vpop.permute.xlu0 %866
  %v869 = vadd.f32 %v335, %v867
  %v870 = vtanh.pop %v869
  %v871 = vsub.f32 1.0, %v858
  %873 = vrot.lane.b32.xlu0 %v870, 96
  %v874 = vpop.permute.xlu0 %873
  %v876 = vmul.f32 %v871, %v874
  %v877 = vmul.f32 %v858, %v773
  %v878 = vadd.f32 %v876, %v877
  %880 = vrot.lane.b32.xlu0 %v878, 96
  %v881 = vpop.permute.xlu0 %880
  %s883 = scalar_lea.vmem %s5, 32
  %884 = vst.msk [vmem:[%s883] sm:$0xff] %vm84, %v881
  %v885 = vsel %vm84, %v881, 0
  %887 = vmatprep.subr.mxu0 0.0
  %888 = vmatpush1.msra.mxu0 0.0
  %889 = vmatprep.subr.mxu0 0.0
  %890 = vmatpush1.msra.mxu0 0.0
  %891 = vmatprep.subr.mxu0 0.0
  %892 = vmatpush1.msra.mxu0 0.0
  %893 = vmatprep.subr.mxu0 0.0
  %894 = vmatpush1.msra.mxu0 0.0
  %895 = vmatprep.subr.mxu0 0.0
  %896 = vmatpush1.msra.mxu0 0.0
  %897 = vmatprep.subr.mxu0 0.0
  %898 = vmatpush1.msra.mxu0 0.0
  %899 = vmatprep.subr.mxu0 0.0
  %900 = vmatpush1.msra.mxu0 0.0
  %901 = vmatprep.subr.mxu0 0.0
  %902 = vmatpush1.msra.mxu0 0.0
  %903 = vmatprep.subr.mxu0 0.0
  %904 = vmatpush1.msra.mxu0 0.0
  %905 = vmatprep.subr.mxu0 0.0
  %906 = vmatpush1.msra.mxu0 0.0
  %907 = vmatprep.subr.mxu0 0.0
  %908 = vmatpush1.msra.mxu0 0.0
  %909 = vmatprep.subr.mxu0 0.0
  %910 = vmatpush1.msra.mxu0 0.0
  %911 = vmatprep.subr.mxu0 0.0
  %912 = vmatpush1.msra.mxu0 %v356
  %913 = vmatprep.subr.mxu0 0.0
  %914 = vmatpush1.msra.mxu0 %v355
  %915 = vmatprep.subr.mxu0 0.0
  %916 = vmatpush1.msra.mxu0 %v354
  %917 = vmatprep.subr.mxu0 0.0
  %918 = vmatpush1.msra.mxu0 %v353
  %919 = vmatprep.subr.mxu0 0.0
  %920 = vmatpush2.msra.mxu0 0.0
  %921 = vmatprep.subr.mxu0 0.0
  %922 = vmatpush2.msra.mxu0 0.0
  %923 = vmatprep.subr.mxu0 0.0
  %924 = vmatpush2.msra.mxu0 0.0
  %925 = vmatprep.subr.mxu0 0.0
  %926 = vmatpush2.msra.mxu0 0.0
  %927 = vmatprep.subr.mxu0 0.0
  %928 = vmatpush2.msra.mxu0 0.0
  %929 = vmatprep.subr.mxu0 0.0
  %930 = vmatpush2.msra.mxu0 0.0
  %931 = vmatprep.subr.mxu0 0.0
  %932 = vmatpush2.msra.mxu0 0.0
  %933 = vmatprep.subr.mxu0 0.0
  %934 = vmatpush2.msra.mxu0 0.0
  %935 = vmatprep.subr.mxu0 0.0
  %936 = vmatpush2.msra.mxu0 0.0
  %937 = vmatprep.subr.mxu0 0.0
  %938 = vmatpush2.msra.mxu0 0.0
  %939 = vmatprep.subr.mxu0 0.0
  %940 = vmatpush2.msra.mxu0 0.0
  %941 = vmatprep.subr.mxu0 0.0
  %942 = vmatpush2.msra.mxu0 0.0
  %943 = vmatprep.subr.mxu0 0.0
  %944 = vmatpush2.msra.mxu0 0.0
  %945 = vmatprep.subr.mxu0 0.0
  %946 = vmatpush2.msra.mxu0 0.0
  %947 = vmatprep.subr.mxu0 0.0
  %948 = vmatpush2.msra.mxu0 0.0
  %949 = vmatprep.subr.mxu0 0.0
  %950 = vmatpush2.msra.mxu0 0.0
  %951 = vmatprep.mubr.f32.mxu0 0.0
  %952 = vmatmul.mubr.f32.gmra.mxu0 %v885
  %v953 = vpop.f32.mrf.mxu0
  %v954 = vadd.f32 0.0, %v953
  %v955 = vpop.f32.mrf.mxu0
  %956 = vdwg.mxu0
  %v957 = vadd.f32 %v340, %v954
  %v958 = vxor.u32 %v957, 2147483648
  %v959 = vmul.f32 %v958, 1.442695
  %v960 = vpow.pop %v959
  %v961 = vadd.f32 %v960, 1.0
  %v962 = vrcp.pop %v961
  %v963 = vmul.f32 1.0, %v962
  %v964 = vadd.f32 %v954, %v438
  %966 = vrot.lane.b32.xlu0 %v964, 64
  %v967 = vpop.permute.xlu0 %966
  %v969 = vmul.f32 %v963, %v967
  %971 = vrot.lane.b32.xlu0 %v969, 64
  %v972 = vpop.permute.xlu0 %971
  %v974 = vadd.f32 %v340, %v972
  %v975 = vtanh.pop %v974
  %v976 = vsub.f32 1.0, %v963
  %978 = vrot.lane.b32.xlu0 %v975, 96
  %v979 = vpop.permute.xlu0 %978
  %v981 = vmul.f32 %v976, %v979
  %v982 = vmul.f32 %v963, %v878
  %v983 = vadd.f32 %v981, %v982
  %985 = vrot.lane.b32.xlu0 %v983, 96
  %v986 = vpop.permute.xlu0 %985
  %s988 = scalar_lea.vmem %s5, 40
  %989 = vst.msk [vmem:[%s988] sm:$0xff] %vm84, %v986
  %v990 = vsel %vm84, %v986, 0
  %992 = vmatprep.subr.mxu0 0.0
  %993 = vmatpush1.msra.mxu0 0.0
  %994 = vmatprep.subr.mxu0 0.0
  %995 = vmatpush1.msra.mxu0 0.0
  %996 = vmatprep.subr.mxu0 0.0
  %997 = vmatpush1.msra.mxu0 0.0
  %998 = vmatprep.subr.mxu0 0.0
  %999 = vmatpush1.msra.mxu0 0.0
  %1000 = vmatprep.subr.mxu0 0.0
  %1001 = vmatpush1.msra.mxu0 0.0
  %1002 = vmatprep.subr.mxu0 0.0
  %1003 = vmatpush1.msra.mxu0 0.0
  %1004 = vmatprep.subr.mxu0 0.0
  %1005 = vmatpush1.msra.mxu0 0.0
  %1006 = vmatprep.subr.mxu0 0.0
  %1007 = vmatpush1.msra.mxu0 0.0
  %1008 = vmatprep.subr.mxu0 0.0
  %1009 = vmatpush1.msra.mxu0 0.0
  %1010 = vmatprep.subr.mxu0 0.0
  %1011 = vmatpush1.msra.mxu0 0.0
  %1012 = vmatprep.subr.mxu0 0.0
  %1013 = vmatpush1.msra.mxu0 0.0
  %1014 = vmatprep.subr.mxu0 0.0
  %1015 = vmatpush1.msra.mxu0 0.0
  %1016 = vmatprep.subr.mxu0 0.0
  %1017 = vmatpush1.msra.mxu0 %v356
  %1018 = vmatprep.subr.mxu0 0.0
  %1019 = vmatpush1.msra.mxu0 %v355
  %1020 = vmatprep.subr.mxu0 0.0
  %1021 = vmatpush1.msra.mxu0 %v354
  %1022 = vmatprep.subr.mxu0 0.0
  %1023 = vmatpush1.msra.mxu0 %v353
  %1024 = vmatprep.subr.mxu0 0.0
  %1025 = vmatpush2.msra.mxu0 0.0
  %1026 = vmatprep.subr.mxu0 0.0
  %1027 = vmatpush2.msra.mxu0 0.0
  %1028 = vmatprep.subr.mxu0 0.0
  %1029 = vmatpush2.msra.mxu0 0.0
  %1030 = vmatprep.subr.mxu0 0.0
  %1031 = vmatpush2.msra.mxu0 0.0
  %1032 = vmatprep.subr.mxu0 0.0
  %1033 = vmatpush2.msra.mxu0 0.0
  %1034 = vmatprep.subr.mxu0 0.0
  %1035 = vmatpush2.msra.mxu0 0.0
  %1036 = vmatprep.subr.mxu0 0.0
  %1037 = vmatpush2.msra.mxu0 0.0
  %1038 = vmatprep.subr.mxu0 0.0
  %1039 = vmatpush2.msra.mxu0 0.0
  %1040 = vmatprep.subr.mxu0 0.0
  %1041 = vmatpush2.msra.mxu0 0.0
  %1042 = vmatprep.subr.mxu0 0.0
  %1043 = vmatpush2.msra.mxu0 0.0
  %1044 = vmatprep.subr.mxu0 0.0
  %1045 = vmatpush2.msra.mxu0 0.0
  %1046 = vmatprep.subr.mxu0 0.0
  %1047 = vmatpush2.msra.mxu0 0.0
  %1048 = vmatprep.subr.mxu0 0.0
  %1049 = vmatpush2.msra.mxu0 0.0
  %1050 = vmatprep.subr.mxu0 0.0
  %1051 = vmatpush2.msra.mxu0 0.0
  %1052 = vmatprep.subr.mxu0 0.0
  %1053 = vmatpush2.msra.mxu0 0.0
  %1054 = vmatprep.subr.mxu0 0.0
  %1055 = vmatpush2.msra.mxu0 0.0
  %1056 = vmatprep.mubr.f32.mxu0 0.0
  %1057 = vmatmul.mubr.f32.gmra.mxu0 %v990
  %v1058 = vpop.f32.mrf.mxu0
  %v1059 = vadd.f32 0.0, %v1058
  %v1060 = vpop.f32.mrf.mxu0
  %1061 = vdwg.mxu0
  %v1062 = vadd.f32 %v345, %v1059
  %v1063 = vxor.u32 %v1062, 2147483648
  %v1064 = vmul.f32 %v1063, 1.442695
  %v1065 = vpow.pop %v1064
  %v1066 = vadd.f32 %v1065, 1.0
  %v1067 = vrcp.pop %v1066
  %v1068 = vmul.f32 1.0, %v1067
  %v1069 = vadd.f32 %v1059, %v438
  %1071 = vrot.lane.b32.xlu0 %v1069, 64
  %v1072 = vpop.permute.xlu0 %1071
  %v1074 = vmul.f32 %v1068, %v1072
  %1076 = vrot.lane.b32.xlu0 %v1074, 64
  %v1077 = vpop.permute.xlu0 %1076
  %v1079 = vadd.f32 %v345, %v1077
  %v1080 = vtanh.pop %v1079
  %v1081 = vsub.f32 1.0, %v1068
  %1083 = vrot.lane.b32.xlu0 %v1080, 96
  %v1084 = vpop.permute.xlu0 %1083
  %v1086 = vmul.f32 %v1081, %v1084
  %v1087 = vmul.f32 %v1068, %v983
  %v1088 = vadd.f32 %v1086, %v1087
  %1090 = vrot.lane.b32.xlu0 %v1088, 96
  %v1091 = vpop.permute.xlu0 %1090
  %s1093 = scalar_lea.vmem %s5, 48
  %1094 = vst.msk [vmem:[%s1093] sm:$0xff] %vm84, %v1091
  %v1095 = vsel %vm84, %v1091, 0
  %1097 = vmatprep.subr.mxu0 0.0
  %1098 = vmatpush1.msra.mxu0 0.0
  %1099 = vmatprep.subr.mxu0 0.0
  %1100 = vmatpush1.msra.mxu0 0.0
  %1101 = vmatprep.subr.mxu0 0.0
  %1102 = vmatpush1.msra.mxu0 0.0
  %1103 = vmatprep.subr.mxu0 0.0
  %1104 = vmatpush1.msra.mxu0 0.0
  %1105 = vmatprep.subr.mxu0 0.0
  %1106 = vmatpush1.msra.mxu0 0.0
  %1107 = vmatprep.subr.mxu0 0.0
  %1108 = vmatpush1.msra.mxu0 0.0
  %1109 = vmatprep.subr.mxu0 0.0
  %1110 = vmatpush1.msra.mxu0 0.0
  %1111 = vmatprep.subr.mxu0 0.0
  %1112 = vmatpush1.msra.mxu0 0.0
  %1113 = vmatprep.subr.mxu0 0.0
  %1114 = vmatpush1.msra.mxu0 0.0
  %1115 = vmatprep.subr.mxu0 0.0
  %1116 = vmatpush1.msra.mxu0 0.0
  %1117 = vmatprep.subr.mxu0 0.0
  %1118 = vmatpush1.msra.mxu0 0.0
  %1119 = vmatprep.subr.mxu0 0.0
  %1120 = vmatpush1.msra.mxu0 0.0
  %1121 = vmatprep.subr.mxu0 0.0
  %1122 = vmatpush1.msra.mxu0 %v356
  %1123 = vmatprep.subr.mxu0 0.0
  %1124 = vmatpush1.msra.mxu0 %v355
  %1125 = vmatprep.subr.mxu0 0.0
  %1126 = vmatpush1.msra.mxu0 %v354
  %1127 = vmatprep.subr.mxu0 0.0
  %1128 = vmatpush1.msra.mxu0 %v353
  %1129 = vmatprep.subr.mxu0 0.0
  %1130 = vmatpush2.msra.mxu0 0.0
  %1131 = vmatprep.subr.mxu0 0.0
  %1132 = vmatpush2.msra.mxu0 0.0
  %1133 = vmatprep.subr.mxu0 0.0
  %1134 = vmatpush2.msra.mxu0 0.0
  %1135 = vmatprep.subr.mxu0 0.0
  %1136 = vmatpush2.msra.mxu0 0.0
  %1137 = vmatprep.subr.mxu0 0.0
  %1138 = vmatpush2.msra.mxu0 0.0
  %1139 = vmatprep.subr.mxu0 0.0
  %1140 = vmatpush2.msra.mxu0 0.0
  %1141 = vmatprep.subr.mxu0 0.0
  %1142 = vmatpush2.msra.mxu0 0.0
  %1143 = vmatprep.subr.mxu0 0.0
  %1144 = vmatpush2.msra.mxu0 0.0
  %1145 = vmatprep.subr.mxu0 0.0
  %1146 = vmatpush2.msra.mxu0 0.0
  %1147 = vmatprep.subr.mxu0 0.0
  %1148 = vmatpush2.msra.mxu0 0.0
  %1149 = vmatprep.subr.mxu0 0.0
  %1150 = vmatpush2.msra.mxu0 0.0
  %1151 = vmatprep.subr.mxu0 0.0
  %1152 = vmatpush2.msra.mxu0 0.0
  %1153 = vmatprep.subr.mxu0 0.0
  %1154 = vmatpush2.msra.mxu0 0.0
  %1155 = vmatprep.subr.mxu0 0.0
  %1156 = vmatpush2.msra.mxu0 0.0
  %1157 = vmatprep.subr.mxu0 0.0
  %1158 = vmatpush2.msra.mxu0 0.0
  %1159 = vmatprep.subr.mxu0 0.0
  %1160 = vmatpush2.msra.mxu0 0.0
  %1161 = vmatprep.mubr.f32.mxu0 0.0
  %1162 = vmatmul.mubr.f32.gmra.mxu0 %v1095
  %v1163 = vpop.f32.mrf.mxu0
  %v1164 = vadd.f32 0.0, %v1163
  %v1165 = vpop.f32.mrf.mxu0
  %1166 = vdwg.mxu0
  %v1167 = vadd.f32 %v350, %v1164
  %v1168 = vxor.u32 %v1167, 2147483648
  %v1169 = vmul.f32 %v1168, 1.442695
  %v1170 = vpow.pop %v1169
  %v1171 = vadd.f32 %v1170, 1.0
  %v1172 = vrcp.pop %v1171
  %v1173 = vmul.f32 1.0, %v1172
  %v1174 = vadd.f32 %v1164, %v438
  %1176 = vrot.lane.b32.xlu0 %v1174, 64
  %v1177 = vpop.permute.xlu0 %1176
  %v1179 = vmul.f32 %v1173, %v1177
  %1181 = vrot.lane.b32.xlu0 %v1179, 64
  %v1182 = vpop.permute.xlu0 %1181
  %v1184 = vadd.f32 %v350, %v1182
  %v1185 = vtanh.pop %v1184
  %v1186 = vsub.f32 1.0, %v1173
  %1188 = vrot.lane.b32.xlu0 %v1185, 96
  %v1189 = vpop.permute.xlu0 %1188
  %v1191 = vmul.f32 %v1186, %v1189
  %v1192 = vmul.f32 %v1173, %v1088
  %v1193 = vadd.f32 %v1191, %v1192
  %1195 = vrot.lane.b32.xlu0 %v1193, 96
  %v1196 = vpop.permute.xlu0 %1195
  %s1198 = scalar_lea.vmem %s5, 56
  %1199 = vst.msk [vmem:[%s1198] sm:$0xff] %vm84, %v1196
  %1200 = vst.msk [vmem:[%s6] sm:$0xff] %vm84, %v1196
  // Predicated region
  $region22: #{encoder_gru_forward.1} parent=0 // pred_check
    _
  $region23: #{encoder_gru_forward.1} parent=0 // pred_check_branch
    %1202 = sbr.rel (0) target = $region25
  $region24: #{encoder_gru_forward.1} parent=0 // pred_region
    _
  $region25: #{encoder_gru_forward.1} parent=0 // pred_fallthru
    _
  // Predicated region
  $region26: #{encoder_gru_forward.1} parent=0 // pred_check
    _
  $region27: #{encoder_gru_forward.1} parent=0 // pred_check_branch
    %1204 = sbr.rel (0) target = $region29
  $region28: #{encoder_gru_forward.1} parent=0 // pred_region
    _
  $region29: #{encoder_gru_forward.1} parent=0 // pred_fallthru
    _
  // Predicated region
  $region30: #{encoder_gru_forward.1} parent=0 // pred_check
    _
  $region31: #{encoder_gru_forward.1} parent=0 // pred_check_branch
    %1206 = sbr.rel (0) target = $region33
  $region32: #{encoder_gru_forward.1} parent=0 // pred_region
    _
  $region33: #{encoder_gru_forward.1} parent=0 // pred_fallthru
    _
  // Predicated region
  $region34: #{encoder_gru_forward.1} parent=0 // pred_check
    _
  $region35: #{encoder_gru_forward.1} parent=0 // pred_check_branch
    %1208 = sbr.rel (0) target = $region37
  $region36: #{encoder_gru_forward.1} parent=0 // pred_region
    _
  $region37: #{encoder_gru_forward.1} parent=0 // pred_fallthru
    _

</llo_original>
